<compile_context>
chip_gen: v6e
topology: v6e:2x2x1
jax: 0.10.0
libtpu: 0.0.40
codegen_flags: <defaults>
</compile_context>

<pallas_src>
import functools

import jax
import jax.numpy as jnp
import numpy as np
from jax.experimental import pallas as pl
from jax.experimental.pallas import tpu as pltpu

C = 8                      # Cin == Cout == 8
KH = KW = 5                # conv kernel
H = W = 16                 # canvas spatial size; valid sizes: 16 -> 12 -> 8 -> 4
HW = H * W                 # 256 lanes (2 full lane groups, no masked stores)
NTAPS = KH * KW            # 25
K_RAW = NTAPS * C          # 200 = real contraction length
K_PAD = 256                # padded so both matmul operands are tile aligned
N_MID = 128                # lane width of stage-2 / stage-3 canvases & output

H1 = H - (KH - 1)          # 12 : conv1 valid size
H2 = H1 - (KH - 1)         # 8  : conv2 valid size
H3 = H2 - (KH - 1)         # 4  : conv3 valid size
H_OUT = H3

# ---- Static safety checks for the roll-and-wrap im2col scheme -------------
# These tie the 16x16 canvas to the 5x5 / 3-conv shrink schedule; any change
# to H, W, KH, KW, the number of stages, or N_MID must re-satisfy them.
assert H3 >= 1, "three stacked 5x5 valid convs need H >= 13"
# conv2 only reads conv1 at true (non-wrapping) valid conv1 anchors, all of
# which live in lanes < HW of the stage-1 (256-lane) canvas.
assert (H2 - 1) + (KH - 1) <= H1 - 1 <= H - KH
assert (H2 + KH - 2) * W + (H2 + KW - 2) < HW          # 187 < 256
# conv3 only reads conv2 at true valid conv2 anchors, all of which live in
# lanes < N_MID of the stage-2 (128-lane) canvas.
assert (H3 - 1) + (KH - 1) <= H2 - 1
assert (H3 + KH - 2) * W + (H3 + KW - 2) < N_MID       # 119 < 128
# the valid H3 x H3 output lives entirely inside the 128-lane output block.
assert (H3 - 1) * W + (H3 - 1) < N_MID                 # 51 < 128


def fused_conv3_kernel(x_ref, w_ref, b_ref, o_ref, col_ref, *, consts):
    """Three stacked valid 5x5 convs (+bias +const +ReLU), fully VMEM resident.

    Per grid step (one batch element):
      x_ref:   (C, HW)     input canvas: channels on sublanes, flat H*W on lanes
      w_ref:   (C, K_PAD)  packed weight; column (i*KW+j)*C + ci == w[co,ci,i,j];
                           columns >= K_RAW are zero (VMEM-resident across grid)
      b_ref:   (C, 1)      conv bias (VMEM-resident across grid)
      o_ref:   (C, N_MID)  output canvas of conv3 (valid 4x4 at lanes y*W+x, y,x<4)
      col_ref: (K_PAD, HW) f32 scratch: im2col matrix, rebuilt per conv
    """
    # Zero the K-padding rows.  w's pad columns are already zero, but scratch
    # VMEM may hold NaN/Inf garbage and 0*NaN = NaN, so zero explicitly.  Done
    # every grid step (not gated on program_id==0) because the batch axis is
    # "parallel": on v7x each core runs its own subset of steps with its own
    # scratch, so a one-time gate would miss core 1.  Cost: 14 aligned vst.
    col_ref[K_RAW:K_PAD, :] = jnp.zeros((K_PAD - K_RAW, HW), jnp.float32)

    # Weight halves for the split-K matmuls; loaded once, reused by all stages.
    w_lo = w_ref[:, 0:128]         # (C, 128)
    w_hi = w_ref[:, 128:K_PAD]     # (C, 128)
    bias = b_ref[...]              # (C, 1)

    def conv_bias_relu(a, n_out, add_const):
        # Build im2col columns [0, n_out): row block t = i*KW + j holds the
        # canvas rolled so that lane p exposes input element at flat position
        # p + i*W + j (the receptive-field tap of a valid conv anchored at p).
        n_in = a.shape[1]
        for i in range(KH):
            for j in range(KW):
                t = i * KW + j
                off = i * W + j
                if off == 0:
                    shifted = a
                else:
                    # jnp.roll semantics: result[p] = a[(p - shift) % n_in]
                    # shift = n_in - off  =>  result[p] = a[(p + off) % n_in]
                    shifted = pltpu.roll(a, shift=n_in - off, axis=1)
                col_ref[t * C:(t + 1) * C, 0:n_out] = shifted[:, 0:n_out]
        # One MXU matmul per conv, split into two K=128 accumulating dots so
        # the live RHS value never approaches the 64-vreg file:
        #   (8,128)@(128,n_out) + (8,128)@(128,n_out).
        y = jnp.dot(w_lo, col_ref[0:128, 0:n_out],
                    preferred_element_type=jnp.float32)
        y += jnp.dot(w_hi, col_ref[128:K_PAD, 0:n_out],
                     preferred_element_type=jnp.float32)
        return jnp.maximum(y + (bias + add_const), 0.0)

    a = x_ref[...]                                # (C, 256)
    a = conv_bias_relu(a, HW, consts[0])          # conv1: 16x16 -> 12x12, N=256
    a = conv_bias_relu(a, N_MID, consts[1])       # conv2: 12x12 ->  8x8, N=128
    a = conv_bias_relu(a, N_MID, consts[2])       # conv3:  8x8 ->  4x4, N=128
    o_ref[...] = a


def fused_forward(x_canvas, w_mat, b_col):
    """x_canvas: (B, C, HW); w_mat: (C, K_PAD); b_col: (C, 1) -> (B, C, N_MID)."""
    B = x_canvas.shape[0]
    kernel = functools.partial(fused_conv3_kernel, consts=(-0.75, -1.0, 0.25))
    return pl.pallas_call(
        kernel,
        out_shape=jax.ShapeDtypeStruct((B, C, N_MID), jnp.float32),
        grid=(B,),
        in_specs=[
            # per-batch input canvas (batch dim squeezed away in the kernel)
            pl.BlockSpec((None, C, HW), lambda bb: (bb, 0, 0)),
            # weight / bias: same block every step -> stays VMEM-resident
            pl.BlockSpec((C, K_PAD), lambda bb: (0, 0)),
            pl.BlockSpec((C, 1), lambda bb: (0, 0)),
        ],
        out_specs=pl.BlockSpec((None, C, N_MID), lambda bb: (bb, 0, 0)),
        scratch_shapes=[pltpu.VMEM((K_PAD, HW), jnp.float32)],
        compiler_params=pltpu.CompilerParams(
            dimension_semantics=("parallel",),
        ),
        cost_estimate=pl.CostEstimate(
            flops=B * 2 * C * K_PAD * (HW + 2 * N_MID),
            transcendentals=0,
            bytes_accessed=4 * (B * C * (HW + N_MID) + C * K_PAD + C),
        ),
    )(x_canvas, w_mat, b_col)


@jax.jit
def model_forward(x_nchw, w_mat, b_col):
    # (B, C, H, W) -> (B, C, H*W): contiguous flatten; channels land on
    # sublanes, the flat spatial dim on lanes -- no transpose on the way in.
    B = x_nchw.shape[0]
    x_canvas = x_nchw.reshape(B, C, HW)
    out_canvas = fused_forward(x_canvas, w_mat, b_col)       # (B, C, 128)
    # The third conv's valid output is the 4x4 top-left window of the canvas.
    out = out_canvas.reshape(B, C, N_MID // W, W)[:, :, :H_OUT, :H_OUT]
    return out


def pack_weight(w_oihw):
    """(Cout, Cin, KH, KW) -> (Cout, K_PAD) with column (i*KW+j)*Cin + ci."""
    w_mat = jnp.transpose(w_oihw, (0, 2, 3, 1)).reshape(C, K_RAW)
    return jnp.pad(w_mat, ((0, 0), (0, K_PAD - K_RAW)))


def reference_forward(x_nchw, w_oihw, b):
    """Pure-JAX reference (lax conv) for the correctness check."""
    def conv(x):
        y = jax.lax.conv_general_dilated(
            x, w_oihw, window_strides=(1, 1), padding="VALID",
            dimension_numbers=("NCHW", "OIHW", "NCHW"),
            precision=jax.lax.Precision.HIGHEST,
        )
        return y + b.reshape(1, -1, 1, 1)

    x = jnp.maximum(conv(x_nchw) - 0.75, 0.0)
    x = jnp.maximum(conv(x) - 1.0, 0.0)
    x = jnp.maximum(conv(x) + 0.25, 0.0)
    return x


if __name__ == "__main__":
    key = jax.random.PRNGKey(0)
    kx, kw, kb = jax.random.split(key, 3)

    B = 2
    x = jax.random.normal(kx, (B, C, H, W), dtype=jnp.float32)

    # Deterministic parameter init (kaiming-uniform-like bound, as in nn.Conv2d).
    fan_in = C * KH * KW
    bound = 1.0 / np.sqrt(fan_in)
    w_oihw = jax.random.uniform(kw, (C, C, KH, KW), jnp.float32, -bound, bound)
    b = jax.random.uniform(kb, (C,), jnp.float32, -bound, bound)

    # One-time weight/bias re-layout (module-init-time prep, outside the jit).
    w_mat = pack_weight(w_oihw)
    b_col = b.reshape(C, 1)

    out = model_forward(x, w_mat, b_col)
    out = jax.block_until_ready(out)

    ref = reference_forward(x, w_oihw, b)
    assert out.shape == (B, C, H_OUT, H_OUT), out.shape
    err = float(np.max(np.abs(np.asarray(out) - np.asarray(ref))))
    assert np.allclose(np.asarray(out), np.asarray(ref), atol=5e-4, rtol=5e-4), err

    print("KERNEL_OK")
</pallas_src>

<mosaic_0001>
module attributes {stable_mosaic.version = 11 : i64} {
  func.func @fused_conv3_kernel(%arg0: i32, %arg1: memref<1x8x256xf32, #tpu.memory_space<vmem>>, %arg2: memref<8x256xf32, #tpu.memory_space<vmem>>, %arg3: memref<8x1xf32, #tpu.memory_space<vmem>>, %arg4: memref<1x8x128xf32, #tpu.memory_space<vmem>>, %arg5: memref<256x256xf32, #tpu.memory_space<vmem>>) attributes {dimension_semantics = [#tpu.dimension_semantics<parallel>], iteration_bounds = array<i64: 2>, scalar_prefetch = 0 : i64, scratch_operands = 1 : i64, tpu.core_type = #tpu.core_type<tc>, window_params = [{transform_indices = @transform_0, window_bounds = array<i64: 1, 8, 256>}, {pipeline_mode = #tpu.pipeline_mode<synchronous>, transform_indices = @transform_1, window_bounds = array<i64: 8, 256>}, {pipeline_mode = #tpu.pipeline_mode<synchronous>, transform_indices = @transform_2, window_bounds = array<i64: 8, 1>}, {transform_indices = @transform_3, window_bounds = array<i64: 1, 8, 128>}]} {
    %cst = arith.constant 0.000000e+00 : f32
    %0 = vector.broadcast %cst : f32 to vector<56x256xf32>
    %c200 = arith.constant 200 : index
    %c0 = arith.constant 0 : index
    %1 = vector.load %arg5[%c200, %c0] : memref<256x256xf32, #tpu.memory_space<vmem>>, vector<56x256xf32>
    tpu.vector_store %arg5[%c200, %c0], %0 {strides = array<i32>} : memref<256x256xf32, #tpu.memory_space<vmem>>, vector<56x256xf32>,
    %c0_0 = arith.constant 0 : index
    %c0_1 = arith.constant 0 : index
    %2 = vector.load %arg2[%c0_0, %c0_1] : memref<8x256xf32, #tpu.memory_space<vmem>>, vector<8x128xf32>
    %c0_2 = arith.constant 0 : index
    %c128 = arith.constant 128 : index
    %3 = vector.load %arg2[%c0_2, %c128] : memref<8x256xf32, #tpu.memory_space<vmem>>, vector<8x128xf32>
    %c0_3 = arith.constant 0 : index
    %c0_4 = arith.constant 0 : index
    %4 = vector.load %arg3[%c0_3, %c0_4] : memref<8x1xf32, #tpu.memory_space<vmem>>, vector<8x1xf32>
    %c0_5 = arith.constant 0 : index
    %c0_6 = arith.constant 0 : index
    %c0_7 = arith.constant 0 : index
    %5 = vector.load %arg1[%c0_5, %c0_6, %c0_7] : memref<1x8x256xf32, #tpu.memory_space<vmem>>, vector<1x8x256xf32>
    %6 = vector.shape_cast %5 : vector<1x8x256xf32> to vector<8x256xf32>
    %c0_8 = arith.constant 0 : index
    %c0_9 = arith.constant 0 : index
    %7 = vector.load %arg5[%c0_8, %c0_9] : memref<256x256xf32, #tpu.memory_space<vmem>>, vector<8x256xf32>
    tpu.vector_store %arg5[%c0_8, %c0_9], %6 {strides = array<i32>} : memref<256x256xf32, #tpu.memory_space<vmem>>, vector<8x256xf32>,
    %c255_i32 = arith.constant 255 : i32
    %8 = tpu.dynamic_rotate %6 by %c255_i32 dim 1 : vector<8x256xf32>, i32 -> vector<8x256xf32>
    %c8 = arith.constant 8 : index
    %c0_10 = arith.constant 0 : index
    %9 = vector.load %arg5[%c8, %c0_10] : memref<256x256xf32, #tpu.memory_space<vmem>>, vector<8x256xf32>
    tpu.vector_store %arg5[%c8, %c0_10], %8 {strides = array<i32>} : memref<256x256xf32, #tpu.memory_space<vmem>>, vector<8x256xf32>,
    %c254_i32 = arith.constant 254 : i32
    %10 = tpu.dynamic_rotate %6 by %c254_i32 dim 1 : vector<8x256xf32>, i32 -> vector<8x256xf32>
    %c16 = arith.constant 16 : index
    %c0_11 = arith.constant 0 : index
    %11 = vector.load %arg5[%c16, %c0_11] : memref<256x256xf32, #tpu.memory_space<vmem>>, vector<8x256xf32>
    tpu.vector_store %arg5[%c16, %c0_11], %10 {strides = array<i32>} : memref<256x256xf32, #tpu.memory_space<vmem>>, vector<8x256xf32>,
    %c253_i32 = arith.constant 253 : i32
    %12 = tpu.dynamic_rotate %6 by %c253_i32 dim 1 : vector<8x256xf32>, i32 -> vector<8x256xf32>
    %c24 = arith.constant 24 : index
    %c0_12 = arith.constant 0 : index
    %13 = vector.load %arg5[%c24, %c0_12] : memref<256x256xf32, #tpu.memory_space<vmem>>, vector<8x256xf32>
    tpu.vector_store %arg5[%c24, %c0_12], %12 {strides = array<i32>} : memref<256x256xf32, #tpu.memory_space<vmem>>, vector<8x256xf32>,
    %c252_i32 = arith.constant 252 : i32
    %14 = tpu.dynamic_rotate %6 by %c252_i32 dim 1 : vector<8x256xf32>, i32 -> vector<8x256xf32>
    %c32 = arith.constant 32 : index
    %c0_13 = arith.constant 0 : index
    %15 = vector.load %arg5[%c32, %c0_13] : memref<256x256xf32, #tpu.memory_space<vmem>>, vector<8x256xf32>
    tpu.vector_store %arg5[%c32, %c0_13], %14 {strides = array<i32>} : memref<256x256xf32, #tpu.memory_space<vmem>>, vector<8x256xf32>,
    %c240_i32 = arith.constant 240 : i32
    %16 = tpu.dynamic_rotate %6 by %c240_i32 dim 1 : vector<8x256xf32>, i32 -> vector<8x256xf32>
    %c40 = arith.constant 40 : index
    %c0_14 = arith.constant 0 : index
    %17 = vector.load %arg5[%c40, %c0_14] : memref<256x256xf32, #tpu.memory_space<vmem>>, vector<8x256xf32>
    tpu.vector_store %arg5[%c40, %c0_14], %16 {strides = array<i32>} : memref<256x256xf32, #tpu.memory_space<vmem>>, vector<8x256xf32>,
    %c239_i32 = arith.constant 239 : i32
    %18 = tpu.dynamic_rotate %6 by %c239_i32 dim 1 : vector<8x256xf32>, i32 -> vector<8x256xf32>
    %c48 = arith.constant 48 : index
    %c0_15 = arith.constant 0 : index
    %19 = vector.load %arg5[%c48, %c0_15] : memref<256x256xf32, #tpu.memory_space<vmem>>, vector<8x256xf32>
    tpu.vector_store %arg5[%c48, %c0_15], %18 {strides = array<i32>} : memref<256x256xf32, #tpu.memory_space<vmem>>, vector<8x256xf32>,
    %c238_i32 = arith.constant 238 : i32
    %20 = tpu.dynamic_rotate %6 by %c238_i32 dim 1 : vector<8x256xf32>, i32 -> vector<8x256xf32>
    %c56 = arith.constant 56 : index
    %c0_16 = arith.constant 0 : index
    %21 = vector.load %arg5[%c56, %c0_16] : memref<256x256xf32, #tpu.memory_space<vmem>>, vector<8x256xf32>
    tpu.vector_store %arg5[%c56, %c0_16], %20 {strides = array<i32>} : memref<256x256xf32, #tpu.memory_space<vmem>>, vector<8x256xf32>,
    %c237_i32 = arith.constant 237 : i32
    %22 = tpu.dynamic_rotate %6 by %c237_i32 dim 1 : vector<8x256xf32>, i32 -> vector<8x256xf32>
    %c64 = arith.constant 64 : index
    %c0_17 = arith.constant 0 : index
    %23 = vector.load %arg5[%c64, %c0_17] : memref<256x256xf32, #tpu.memory_space<vmem>>, vector<8x256xf32>
    tpu.vector_store %arg5[%c64, %c0_17], %22 {strides = array<i32>} : memref<256x256xf32, #tpu.memory_space<vmem>>, vector<8x256xf32>,
    %c236_i32 = arith.constant 236 : i32
    %24 = tpu.dynamic_rotate %6 by %c236_i32 dim 1 : vector<8x256xf32>, i32 -> vector<8x256xf32>
    %c72 = arith.constant 72 : index
    %c0_18 = arith.constant 0 : index
    %25 = vector.load %arg5[%c72, %c0_18] : memref<256x256xf32, #tpu.memory_space<vmem>>, vector<8x256xf32>
    tpu.vector_store %arg5[%c72, %c0_18], %24 {strides = array<i32>} : memref<256x256xf32, #tpu.memory_space<vmem>>, vector<8x256xf32>,
    %c224_i32 = arith.constant 224 : i32
    %26 = tpu.dynamic_rotate %6 by %c224_i32 dim 1 : vector<8x256xf32>, i32 -> vector<8x256xf32>
    %c80 = arith.constant 80 : index
    %c0_19 = arith.constant 0 : index
    %27 = vector.load %arg5[%c80, %c0_19] : memref<256x256xf32, #tpu.memory_space<vmem>>, vector<8x256xf32>
    tpu.vector_store %arg5[%c80, %c0_19], %26 {strides = array<i32>} : memref<256x256xf32, #tpu.memory_space<vmem>>, vector<8x256xf32>,
    %c223_i32 = arith.constant 223 : i32
    %28 = tpu.dynamic_rotate %6 by %c223_i32 dim 1 : vector<8x256xf32>, i32 -> vector<8x256xf32>
    %c88 = arith.constant 88 : index
    %c0_20 = arith.constant 0 : index
    %29 = vector.load %arg5[%c88, %c0_20] : memref<256x256xf32, #tpu.memory_space<vmem>>, vector<8x256xf32>
    tpu.vector_store %arg5[%c88, %c0_20], %28 {strides = array<i32>} : memref<256x256xf32, #tpu.memory_space<vmem>>, vector<8x256xf32>,
    %c222_i32 = arith.constant 222 : i32
    %30 = tpu.dynamic_rotate %6 by %c222_i32 dim 1 : vector<8x256xf32>, i32 -> vector<8x256xf32>
    %c96 = arith.constant 96 : index
    %c0_21 = arith.constant 0 : index
    %31 = vector.load %arg5[%c96, %c0_21] : memref<256x256xf32, #tpu.memory_space<vmem>>, vector<8x256xf32>
    tpu.vector_store %arg5[%c96, %c0_21], %30 {strides = array<i32>} : memref<256x256xf32, #tpu.memory_space<vmem>>, vector<8x256xf32>,
    %c221_i32 = arith.constant 221 : i32
    %32 = tpu.dynamic_rotate %6 by %c221_i32 dim 1 : vector<8x256xf32>, i32 -> vector<8x256xf32>
    %c104 = arith.constant 104 : index
    %c0_22 = arith.constant 0 : index
    %33 = vector.load %arg5[%c104, %c0_22] : memref<256x256xf32, #tpu.memory_space<vmem>>, vector<8x256xf32>
    tpu.vector_store %arg5[%c104, %c0_22], %32 {strides = array<i32>} : memref<256x256xf32, #tpu.memory_space<vmem>>, vector<8x256xf32>,
    %c220_i32 = arith.constant 220 : i32
    %34 = tpu.dynamic_rotate %6 by %c220_i32 dim 1 : vector<8x256xf32>, i32 -> vector<8x256xf32>
    %c112 = arith.constant 112 : index
    %c0_23 = arith.constant 0 : index
    %35 = vector.load %arg5[%c112, %c0_23] : memref<256x256xf32, #tpu.memory_space<vmem>>, vector<8x256xf32>
    tpu.vector_store %arg5[%c112, %c0_23], %34 {strides = array<i32>} : memref<256x256xf32, #tpu.memory_space<vmem>>, vector<8x256xf32>,
    %c208_i32 = arith.constant 208 : i32
    %36 = tpu.dynamic_rotate %6 by %c208_i32 dim 1 : vector<8x256xf32>, i32 -> vector<8x256xf32>
    %c120 = arith.constant 120 : index
    %c0_24 = arith.constant 0 : index
    %37 = vector.load %arg5[%c120, %c0_24] : memref<256x256xf32, #tpu.memory_space<vmem>>, vector<8x256xf32>
    tpu.vector_store %arg5[%c120, %c0_24], %36 {strides = array<i32>} : memref<256x256xf32, #tpu.memory_space<vmem>>, vector<8x256xf32>,
    %c207_i32 = arith.constant 207 : i32
    %38 = tpu.dynamic_rotate %6 by %c207_i32 dim 1 : vector<8x256xf32>, i32 -> vector<8x256xf32>
    %c128_25 = arith.constant 128 : index
    %c0_26 = arith.constant 0 : index
    %39 = vector.load %arg5[%c128_25, %c0_26] : memref<256x256xf32, #tpu.memory_space<vmem>>, vector<8x256xf32>
    tpu.vector_store %arg5[%c128_25, %c0_26], %38 {strides = array<i32>} : memref<256x256xf32, #tpu.memory_space<vmem>>, vector<8x256xf32>,
    %c206_i32 = arith.constant 206 : i32
    %40 = tpu.dynamic_rotate %6 by %c206_i32 dim 1 : vector<8x256xf32>, i32 -> vector<8x256xf32>
    %c136 = arith.constant 136 : index
    %c0_27 = arith.constant 0 : index
    %41 = vector.load %arg5[%c136, %c0_27] : memref<256x256xf32, #tpu.memory_space<vmem>>, vector<8x256xf32>
    tpu.vector_store %arg5[%c136, %c0_27], %40 {strides = array<i32>} : memref<256x256xf32, #tpu.memory_space<vmem>>, vector<8x256xf32>,
    %c205_i32 = arith.constant 205 : i32
    %42 = tpu.dynamic_rotate %6 by %c205_i32 dim 1 : vector<8x256xf32>, i32 -> vector<8x256xf32>
    %c144 = arith.constant 144 : index
    %c0_28 = arith.constant 0 : index
    %43 = vector.load %arg5[%c144, %c0_28] : memref<256x256xf32, #tpu.memory_space<vmem>>, vector<8x256xf32>
    tpu.vector_store %arg5[%c144, %c0_28], %42 {strides = array<i32>} : memref<256x256xf32, #tpu.memory_space<vmem>>, vector<8x256xf32>,
    %c204_i32 = arith.constant 204 : i32
    %44 = tpu.dynamic_rotate %6 by %c204_i32 dim 1 : vector<8x256xf32>, i32 -> vector<8x256xf32>
    %c152 = arith.constant 152 : index
    %c0_29 = arith.constant 0 : index
    %45 = vector.load %arg5[%c152, %c0_29] : memref<256x256xf32, #tpu.memory_space<vmem>>, vector<8x256xf32>
    tpu.vector_store %arg5[%c152, %c0_29], %44 {strides = array<i32>} : memref<256x256xf32, #tpu.memory_space<vmem>>, vector<8x256xf32>,
    %c192_i32 = arith.constant 192 : i32
    %46 = tpu.dynamic_rotate %6 by %c192_i32 dim 1 : vector<8x256xf32>, i32 -> vector<8x256xf32>
    %c160 = arith.constant 160 : index
    %c0_30 = arith.constant 0 : index
    %47 = vector.load %arg5[%c160, %c0_30] : memref<256x256xf32, #tpu.memory_space<vmem>>, vector<8x256xf32>
    tpu.vector_store %arg5[%c160, %c0_30], %46 {strides = array<i32>} : memref<256x256xf32, #tpu.memory_space<vmem>>, vector<8x256xf32>,
    %c191_i32 = arith.constant 191 : i32
    %48 = tpu.dynamic_rotate %6 by %c191_i32 dim 1 : vector<8x256xf32>, i32 -> vector<8x256xf32>
    %c168 = arith.constant 168 : index
    %c0_31 = arith.constant 0 : index
    %49 = vector.load %arg5[%c168, %c0_31] : memref<256x256xf32, #tpu.memory_space<vmem>>, vector<8x256xf32>
    tpu.vector_store %arg5[%c168, %c0_31], %48 {strides = array<i32>} : memref<256x256xf32, #tpu.memory_space<vmem>>, vector<8x256xf32>,
    %c190_i32 = arith.constant 190 : i32
    %50 = tpu.dynamic_rotate %6 by %c190_i32 dim 1 : vector<8x256xf32>, i32 -> vector<8x256xf32>
    %c176 = arith.constant 176 : index
    %c0_32 = arith.constant 0 : index
    %51 = vector.load %arg5[%c176, %c0_32] : memref<256x256xf32, #tpu.memory_space<vmem>>, vector<8x256xf32>
    tpu.vector_store %arg5[%c176, %c0_32], %50 {strides = array<i32>} : memref<256x256xf32, #tpu.memory_space<vmem>>, vector<8x256xf32>,
    %c189_i32 = arith.constant 189 : i32
    %52 = tpu.dynamic_rotate %6 by %c189_i32 dim 1 : vector<8x256xf32>, i32 -> vector<8x256xf32>
    %c184 = arith.constant 184 : index
    %c0_33 = arith.constant 0 : index
    %53 = vector.load %arg5[%c184, %c0_33] : memref<256x256xf32, #tpu.memory_space<vmem>>, vector<8x256xf32>
    tpu.vector_store %arg5[%c184, %c0_33], %52 {strides = array<i32>} : memref<256x256xf32, #tpu.memory_space<vmem>>, vector<8x256xf32>,
    %c188_i32 = arith.constant 188 : i32
    %54 = tpu.dynamic_rotate %6 by %c188_i32 dim 1 : vector<8x256xf32>, i32 -> vector<8x256xf32>
    %c192 = arith.constant 192 : index
    %c0_34 = arith.constant 0 : index
    %55 = vector.load %arg5[%c192, %c0_34] : memref<256x256xf32, #tpu.memory_space<vmem>>, vector<8x256xf32>
    tpu.vector_store %arg5[%c192, %c0_34], %54 {strides = array<i32>} : memref<256x256xf32, #tpu.memory_space<vmem>>, vector<8x256xf32>,
    %c0_35 = arith.constant 0 : index
    %c0_36 = arith.constant 0 : index
    %56 = vector.load %arg5[%c0_35, %c0_36] : memref<256x256xf32, #tpu.memory_space<vmem>>, vector<128x256xf32>
    %cst_37 = arith.constant dense<0.000000e+00> : vector<8x256xf32>
    %57 = tpu.matmul %2, %56, %cst_37 {dimension_numbers = #tpu.dot_dimension_numbers<[1], [0], [0], [1], [0, 0, 1, 1], [], []>} : vector<8x128xf32>, vector<128x256xf32>, vector<8x256xf32> -> vector<8x256xf32>
    %c128_38 = arith.constant 128 : index
    %c0_39 = arith.constant 0 : index
    %58 = vector.load %arg5[%c128_38, %c0_39] : memref<256x256xf32, #tpu.memory_space<vmem>>, vector<128x256xf32>
    %cst_40 = arith.constant dense<0.000000e+00> : vector<8x256xf32>
    %59 = tpu.matmul %3, %58, %cst_40 {dimension_numbers = #tpu.dot_dimension_numbers<[1], [0], [0], [1], [0, 0, 1, 1], [], []>} : vector<8x128xf32>, vector<128x256xf32>, vector<8x256xf32> -> vector<8x256xf32>
    %60 = arith.addf %57, %59 : vector<8x256xf32>
    %cst_41 = arith.constant -7.500000e-01 : f32
    %61 = vector.broadcast %cst_41 : f32 to vector<8x1xf32>
    %62 = arith.addf %4, %61 : vector<8x1xf32>
    %63 = vector.broadcast %62 : vector<8x1xf32> to vector<8x256xf32>
    %64 = arith.addf %60, %63 : vector<8x256xf32>
    %cst_42 = arith.constant 0.000000e+00 : f32
    %65 = vector.broadcast %cst_42 : f32 to vector<8x256xf32>
    %66 = arith.maximumf %64, %65 : vector<8x256xf32>
    %67 = vector.extract_strided_slice %66 {offsets = [0, 0], sizes = [8, 128], strides = [1, 1]} : vector<8x256xf32> to vector<8x128xf32>
    %c0_43 = arith.constant 0 : index
    %c0_44 = arith.constant 0 : index
    %68 = vector.load %arg5[%c0_43, %c0_44] : memref<256x256xf32, #tpu.memory_space<vmem>>, vector<8x128xf32>
    tpu.vector_store %arg5[%c0_43, %c0_44], %67 {strides = array<i32>} : memref<256x256xf32, #tpu.memory_space<vmem>>, vector<8x128xf32>,
    %c255_i32_45 = arith.constant 255 : i32
    %69 = tpu.dynamic_rotate %66 by %c255_i32_45 dim 1 : vector<8x256xf32>, i32 -> vector<8x256xf32>
    %70 = vector.extract_strided_slice %69 {offsets = [0, 0], sizes = [8, 128], strides = [1, 1]} : vector<8x256xf32> to vector<8x128xf32>
    %c8_46 = arith.constant 8 : index
    %c0_47 = arith.constant 0 : index
    %71 = vector.load %arg5[%c8_46, %c0_47] : memref<256x256xf32, #tpu.memory_space<vmem>>, vector<8x128xf32>
    tpu.vector_store %arg5[%c8_46, %c0_47], %70 {strides = array<i32>} : memref<256x256xf32, #tpu.memory_space<vmem>>, vector<8x128xf32>,
    %c254_i32_48 = arith.constant 254 : i32
    %72 = tpu.dynamic_rotate %66 by %c254_i32_48 dim 1 : vector<8x256xf32>, i32 -> vector<8x256xf32>
    %73 = vector.extract_strided_slice %72 {offsets = [0, 0], sizes = [8, 128], strides = [1, 1]} : vector<8x256xf32> to vector<8x128xf32>
    %c16_49 = arith.constant 16 : index
    %c0_50 = arith.constant 0 : index
    %74 = vector.load %arg5[%c16_49, %c0_50] : memref<256x256xf32, #tpu.memory_space<vmem>>, vector<8x128xf32>
    tpu.vector_store %arg5[%c16_49, %c0_50], %73 {strides = array<i32>} : memref<256x256xf32, #tpu.memory_space<vmem>>, vector<8x128xf32>,
    %c253_i32_51 = arith.constant 253 : i32
    %75 = tpu.dynamic_rotate %66 by %c253_i32_51 dim 1 : vector<8x256xf32>, i32 -> vector<8x256xf32>
    %76 = vector.extract_strided_slice %75 {offsets = [0, 0], sizes = [8, 128], strides = [1, 1]} : vector<8x256xf32> to vector<8x128xf32>
    %c24_52 = arith.constant 24 : index
    %c0_53 = arith.constant 0 : index
    %77 = vector.load %arg5[%c24_52, %c0_53] : memref<256x256xf32, #tpu.memory_space<vmem>>, vector<8x128xf32>
    tpu.vector_store %arg5[%c24_52, %c0_53], %76 {strides = array<i32>} : memref<256x256xf32, #tpu.memory_space<vmem>>, vector<8x128xf32>,
    %c252_i32_54 = arith.constant 252 : i32
    %78 = tpu.dynamic_rotate %66 by %c252_i32_54 dim 1 : vector<8x256xf32>, i32 -> vector<8x256xf32>
    %79 = vector.extract_strided_slice %78 {offsets = [0, 0], sizes = [8, 128], strides = [1, 1]} : vector<8x256xf32> to vector<8x128xf32>
    %c32_55 = arith.constant 32 : index
    %c0_56 = arith.constant 0 : index
    %80 = vector.load %arg5[%c32_55, %c0_56] : memref<256x256xf32, #tpu.memory_space<vmem>>, vector<8x128xf32>
    tpu.vector_store %arg5[%c32_55, %c0_56], %79 {strides = array<i32>} : memref<256x256xf32, #tpu.memory_space<vmem>>, vector<8x128xf32>,
    %c240_i32_57 = arith.constant 240 : i32
    %81 = tpu.dynamic_rotate %66 by %c240_i32_57 dim 1 : vector<8x256xf32>, i32 -> vector<8x256xf32>
    %82 = vector.extract_strided_slice %81 {offsets = [0, 0], sizes = [8, 128], strides = [1, 1]} : vector<8x256xf32> to vector<8x128xf32>
    %c40_58 = arith.constant 40 : index
    %c0_59 = arith.constant 0 : index
    %83 = vector.load %arg5[%c40_58, %c0_59] : memref<256x256xf32, #tpu.memory_space<vmem>>, vector<8x128xf32>
    tpu.vector_store %arg5[%c40_58, %c0_59], %82 {strides = array<i32>} : memref<256x256xf32, #tpu.memory_space<vmem>>, vector<8x128xf32>,
    %c239_i32_60 = arith.constant 239 : i32
    %84 = tpu.dynamic_rotate %66 by %c239_i32_60 dim 1 : vector<8x256xf32>, i32 -> vector<8x256xf32>
    %85 = vector.extract_strided_slice %84 {offsets = [0, 0], sizes = [8, 128], strides = [1, 1]} : vector<8x256xf32> to vector<8x128xf32>
    %c48_61 = arith.constant 48 : index
    %c0_62 = arith.constant 0 : index
    %86 = vector.load %arg5[%c48_61, %c0_62] : memref<256x256xf32, #tpu.memory_space<vmem>>, vector<8x128xf32>
    tpu.vector_store %arg5[%c48_61, %c0_62], %85 {strides = array<i32>} : memref<256x256xf32, #tpu.memory_space<vmem>>, vector<8x128xf32>,
    %c238_i32_63 = arith.constant 238 : i32
    %87 = tpu.dynamic_rotate %66 by %c238_i32_63 dim 1 : vector<8x256xf32>, i32 -> vector<8x256xf32>
    %88 = vector.extract_strided_slice %87 {offsets = [0, 0], sizes = [8, 128], strides = [1, 1]} : vector<8x256xf32> to vector<8x128xf32>
    %c56_64 = arith.constant 56 : index
    %c0_65 = arith.constant 0 : index
    %89 = vector.load %arg5[%c56_64, %c0_65] : memref<256x256xf32, #tpu.memory_space<vmem>>, vector<8x128xf32>
    tpu.vector_store %arg5[%c56_64, %c0_65], %88 {strides = array<i32>} : memref<256x256xf32, #tpu.memory_space<vmem>>, vector<8x128xf32>,
    %c237_i32_66 = arith.constant 237 : i32
    %90 = tpu.dynamic_rotate %66 by %c237_i32_66 dim 1 : vector<8x256xf32>, i32 -> vector<8x256xf32>
    %91 = vector.extract_strided_slice %90 {offsets = [0, 0], sizes = [8, 128], strides = [1, 1]} : vector<8x256xf32> to vector<8x128xf32>
    %c64_67 = arith.constant 64 : index
    %c0_68 = arith.constant 0 : index
    %92 = vector.load %arg5[%c64_67, %c0_68] : memref<256x256xf32, #tpu.memory_space<vmem>>, vector<8x128xf32>
    tpu.vector_store %arg5[%c64_67, %c0_68], %91 {strides = array<i32>} : memref<256x256xf32, #tpu.memory_space<vmem>>, vector<8x128xf32>,
    %c236_i32_69 = arith.constant 236 : i32
    %93 = tpu.dynamic_rotate %66 by %c236_i32_69 dim 1 : vector<8x256xf32>, i32 -> vector<8x256xf32>
    %94 = vector.extract_strided_slice %93 {offsets = [0, 0], sizes = [8, 128], strides = [1, 1]} : vector<8x256xf32> to vector<8x128xf32>
    %c72_70 = arith.constant 72 : index
    %c0_71 = arith.constant 0 : index
    %95 = vector.load %arg5[%c72_70, %c0_71] : memref<256x256xf32, #tpu.memory_space<vmem>>, vector<8x128xf32>
    tpu.vector_store %arg5[%c72_70, %c0_71], %94 {strides = array<i32>} : memref<256x256xf32, #tpu.memory_space<vmem>>, vector<8x128xf32>,
    %c224_i32_72 = arith.constant 224 : i32
    %96 = tpu.dynamic_rotate %66 by %c224_i32_72 dim 1 : vector<8x256xf32>, i32 -> vector<8x256xf32>
    %97 = vector.extract_strided_slice %96 {offsets = [0, 0], sizes = [8, 128], strides = [1, 1]} : vector<8x256xf32> to vector<8x128xf32>
    %c80_73 = arith.constant 80 : index
    %c0_74 = arith.constant 0 : index
    %98 = vector.load %arg5[%c80_73, %c0_74] : memref<256x256xf32, #tpu.memory_space<vmem>>, vector<8x128xf32>
    tpu.vector_store %arg5[%c80_73, %c0_74], %97 {strides = array<i32>} : memref<256x256xf32, #tpu.memory_space<vmem>>, vector<8x128xf32>,
    %c223_i32_75 = arith.constant 223 : i32
    %99 = tpu.dynamic_rotate %66 by %c223_i32_75 dim 1 : vector<8x256xf32>, i32 -> vector<8x256xf32>
    %100 = vector.extract_strided_slice %99 {offsets = [0, 0], sizes = [8, 128], strides = [1, 1]} : vector<8x256xf32> to vector<8x128xf32>
    %c88_76 = arith.constant 88 : index
    %c0_77 = arith.constant 0 : index
    %101 = vector.load %arg5[%c88_76, %c0_77] : memref<256x256xf32, #tpu.memory_space<vmem>>, vector<8x128xf32>
    tpu.vector_store %arg5[%c88_76, %c0_77], %100 {strides = array<i32>} : memref<256x256xf32, #tpu.memory_space<vmem>>, vector<8x128xf32>,
    %c222_i32_78 = arith.constant 222 : i32
    %102 = tpu.dynamic_rotate %66 by %c222_i32_78 dim 1 : vector<8x256xf32>, i32 -> vector<8x256xf32>
    %103 = vector.extract_strided_slice %102 {offsets = [0, 0], sizes = [8, 128], strides = [1, 1]} : vector<8x256xf32> to vector<8x128xf32>
    %c96_79 = arith.constant 96 : index
    %c0_80 = arith.constant 0 : index
    %104 = vector.load %arg5[%c96_79, %c0_80] : memref<256x256xf32, #tpu.memory_space<vmem>>, vector<8x128xf32>
    tpu.vector_store %arg5[%c96_79, %c0_80], %103 {strides = array<i32>} : memref<256x256xf32, #tpu.memory_space<vmem>>, vector<8x128xf32>,
    %c221_i32_81 = arith.constant 221 : i32
    %105 = tpu.dynamic_rotate %66 by %c221_i32_81 dim 1 : vector<8x256xf32>, i32 -> vector<8x256xf32>
    %106 = vector.extract_strided_slice %105 {offsets = [0, 0], sizes = [8, 128], strides = [1, 1]} : vector<8x256xf32> to vector<8x128xf32>
    %c104_82 = arith.constant 104 : index
    %c0_83 = arith.constant 0 : index
    %107 = vector.load %arg5[%c104_82, %c0_83] : memref<256x256xf32, #tpu.memory_space<vmem>>, vector<8x128xf32>
    tpu.vector_store %arg5[%c104_82, %c0_83], %106 {strides = array<i32>} : memref<256x256xf32, #tpu.memory_space<vmem>>, vector<8x128xf32>,
    %c220_i32_84 = arith.constant 220 : i32
    %108 = tpu.dynamic_rotate %66 by %c220_i32_84 dim 1 : vector<8x256xf32>, i32 -> vector<8x256xf32>
    %109 = vector.extract_strided_slice %108 {offsets = [0, 0], sizes = [8, 128], strides = [1, 1]} : vector<8x256xf32> to vector<8x128xf32>
    %c112_85 = arith.constant 112 : index
    %c0_86 = arith.constant 0 : index
    %110 = vector.load %arg5[%c112_85, %c0_86] : memref<256x256xf32, #tpu.memory_space<vmem>>, vector<8x128xf32>
    tpu.vector_store %arg5[%c112_85, %c0_86], %109 {strides = array<i32>} : memref<256x256xf32, #tpu.memory_space<vmem>>, vector<8x128xf32>,
    %c208_i32_87 = arith.constant 208 : i32
    %111 = tpu.dynamic_rotate %66 by %c208_i32_87 dim 1 : vector<8x256xf32>, i32 -> vector<8x256xf32>
    %112 = vector.extract_strided_slice %111 {offsets = [0, 0], sizes = [8, 128], strides = [1, 1]} : vector<8x256xf32> to vector<8x128xf32>
    %c120_88 = arith.constant 120 : index
    %c0_89 = arith.constant 0 : index
    %113 = vector.load %arg5[%c120_88, %c0_89] : memref<256x256xf32, #tpu.memory_space<vmem>>, vector<8x128xf32>
    tpu.vector_store %arg5[%c120_88, %c0_89], %112 {strides = array<i32>} : memref<256x256xf32, #tpu.memory_space<vmem>>, vector<8x128xf32>,
    %c207_i32_90 = arith.constant 207 : i32
    %114 = tpu.dynamic_rotate %66 by %c207_i32_90 dim 1 : vector<8x256xf32>, i32 -> vector<8x256xf32>
    %115 = vector.extract_strided_slice %114 {offsets = [0, 0], sizes = [8, 128], strides = [1, 1]} : vector<8x256xf32> to vector<8x128xf32>
    %c128_91 = arith.constant 128 : index
    %c0_92 = arith.constant 0 : index
    %116 = vector.load %arg5[%c128_91, %c0_92] : memref<256x256xf32, #tpu.memory_space<vmem>>, vector<8x128xf32>
    tpu.vector_store %arg5[%c128_91, %c0_92], %115 {strides = array<i32>} : memref<256x256xf32, #tpu.memory_space<vmem>>, vector<8x128xf32>,
    %c206_i32_93 = arith.constant 206 : i32
    %117 = tpu.dynamic_rotate %66 by %c206_i32_93 dim 1 : vector<8x256xf32>, i32 -> vector<8x256xf32>
    %118 = vector.extract_strided_slice %117 {offsets = [0, 0], sizes = [8, 128], strides = [1, 1]} : vector<8x256xf32> to vector<8x128xf32>
    %c136_94 = arith.constant 136 : index
    %c0_95 = arith.constant 0 : index
    %119 = vector.load %arg5[%c136_94, %c0_95] : memref<256x256xf32, #tpu.memory_space<vmem>>, vector<8x128xf32>
    tpu.vector_store %arg5[%c136_94, %c0_95], %118 {strides = array<i32>} : memref<256x256xf32, #tpu.memory_space<vmem>>, vector<8x128xf32>,
    %c205_i32_96 = arith.constant 205 : i32
    %120 = tpu.dynamic_rotate %66 by %c205_i32_96 dim 1 : vector<8x256xf32>, i32 -> vector<8x256xf32>
    %121 = vector.extract_strided_slice %120 {offsets = [0, 0], sizes = [8, 128], strides = [1, 1]} : vector<8x256xf32> to vector<8x128xf32>
    %c144_97 = arith.constant 144 : index
    %c0_98 = arith.constant 0 : index
    %122 = vector.load %arg5[%c144_97, %c0_98] : memref<256x256xf32, #tpu.memory_space<vmem>>, vector<8x128xf32>
    tpu.vector_store %arg5[%c144_97, %c0_98], %121 {strides = array<i32>} : memref<256x256xf32, #tpu.memory_space<vmem>>, vector<8x128xf32>,
    %c204_i32_99 = arith.constant 204 : i32
    %123 = tpu.dynamic_rotate %66 by %c204_i32_99 dim 1 : vector<8x256xf32>, i32 -> vector<8x256xf32>
    %124 = vector.extract_strided_slice %123 {offsets = [0, 0], sizes = [8, 128], strides = [1, 1]} : vector<8x256xf32> to vector<8x128xf32>
    %c152_100 = arith.constant 152 : index
    %c0_101 = arith.constant 0 : index
    %125 = vector.load %arg5[%c152_100, %c0_101] : memref<256x256xf32, #tpu.memory_space<vmem>>, vector<8x128xf32>
    tpu.vector_store %arg5[%c152_100, %c0_101], %124 {strides = array<i32>} : memref<256x256xf32, #tpu.memory_space<vmem>>, vector<8x128xf32>,
    %c192_i32_102 = arith.constant 192 : i32
    %126 = tpu.dynamic_rotate %66 by %c192_i32_102 dim 1 : vector<8x256xf32>, i32 -> vector<8x256xf32>
    %127 = vector.extract_strided_slice %126 {offsets = [0, 0], sizes = [8, 128], strides = [1, 1]} : vector<8x256xf32> to vector<8x128xf32>
    %c160_103 = arith.constant 160 : index
    %c0_104 = arith.constant 0 : index
    %128 = vector.load %arg5[%c160_103, %c0_104] : memref<256x256xf32, #tpu.memory_space<vmem>>, vector<8x128xf32>
    tpu.vector_store %arg5[%c160_103, %c0_104], %127 {strides = array<i32>} : memref<256x256xf32, #tpu.memory_space<vmem>>, vector<8x128xf32>,
    %c191_i32_105 = arith.constant 191 : i32
    %129 = tpu.dynamic_rotate %66 by %c191_i32_105 dim 1 : vector<8x256xf32>, i32 -> vector<8x256xf32>
    %130 = vector.extract_strided_slice %129 {offsets = [0, 0], sizes = [8, 128], strides = [1, 1]} : vector<8x256xf32> to vector<8x128xf32>
    %c168_106 = arith.constant 168 : index
    %c0_107 = arith.constant 0 : index
    %131 = vector.load %arg5[%c168_106, %c0_107] : memref<256x256xf32, #tpu.memory_space<vmem>>, vector<8x128xf32>
    tpu.vector_store %arg5[%c168_106, %c0_107], %130 {strides = array<i32>} : memref<256x256xf32, #tpu.memory_space<vmem>>, vector<8x128xf32>,
    %c190_i32_108 = arith.constant 190 : i32
    %132 = tpu.dynamic_rotate %66 by %c190_i32_108 dim 1 : vector<8x256xf32>, i32 -> vector<8x256xf32>
    %133 = vector.extract_strided_slice %132 {offsets = [0, 0], sizes = [8, 128], strides = [1, 1]} : vector<8x256xf32> to vector<8x128xf32>
    %c176_109 = arith.constant 176 : index
    %c0_110 = arith.constant 0 : index
    %134 = vector.load %arg5[%c176_109, %c0_110] : memref<256x256xf32, #tpu.memory_space<vmem>>, vector<8x128xf32>
    tpu.vector_store %arg5[%c176_109, %c0_110], %133 {strides = array<i32>} : memref<256x256xf32, #tpu.memory_space<vmem>>, vector<8x128xf32>,
    %c189_i32_111 = arith.constant 189 : i32
    %135 = tpu.dynamic_rotate %66 by %c189_i32_111 dim 1 : vector<8x256xf32>, i32 -> vector<8x256xf32>
    %136 = vector.extract_strided_slice %135 {offsets = [0, 0], sizes = [8, 128], strides = [1, 1]} : vector<8x256xf32> to vector<8x128xf32>
    %c184_112 = arith.constant 184 : index
    %c0_113 = arith.constant 0 : index
    %137 = vector.load %arg5[%c184_112, %c0_113] : memref<256x256xf32, #tpu.memory_space<vmem>>, vector<8x128xf32>
    tpu.vector_store %arg5[%c184_112, %c0_113], %136 {strides = array<i32>} : memref<256x256xf32, #tpu.memory_space<vmem>>, vector<8x128xf32>,
    %c188_i32_114 = arith.constant 188 : i32
    %138 = tpu.dynamic_rotate %66 by %c188_i32_114 dim 1 : vector<8x256xf32>, i32 -> vector<8x256xf32>
    %139 = vector.extract_strided_slice %138 {offsets = [0, 0], sizes = [8, 128], strides = [1, 1]} : vector<8x256xf32> to vector<8x128xf32>
    %c192_115 = arith.constant 192 : index
    %c0_116 = arith.constant 0 : index
    %140 = vector.load %arg5[%c192_115, %c0_116] : memref<256x256xf32, #tpu.memory_space<vmem>>, vector<8x128xf32>
    tpu.vector_store %arg5[%c192_115, %c0_116], %139 {strides = array<i32>} : memref<256x256xf32, #tpu.memory_space<vmem>>, vector<8x128xf32>,
    %c0_117 = arith.constant 0 : index
    %c0_118 = arith.constant 0 : index
    %141 = vector.load %arg5[%c0_117, %c0_118] : memref<256x256xf32, #tpu.memory_space<vmem>>, vector<128x128xf32>
    %cst_119 = arith.constant dense<0.000000e+00> : vector<8x128xf32>
    %142 = tpu.matmul %2, %141, %cst_119 {dimension_numbers = #tpu.dot_dimension_numbers<[1], [0], [0], [1], [0, 0, 1, 1], [], []>} : vector<8x128xf32>, vector<128x128xf32>, vector<8x128xf32> -> vector<8x128xf32>
    %c128_120 = arith.constant 128 : index
    %c0_121 = arith.constant 0 : index
    %143 = vector.load %arg5[%c128_120, %c0_121] : memref<256x256xf32, #tpu.memory_space<vmem>>, vector<128x128xf32>
    %cst_122 = arith.constant dense<0.000000e+00> : vector<8x128xf32>
    %144 = tpu.matmul %3, %143, %cst_122 {dimension_numbers = #tpu.dot_dimension_numbers<[1], [0], [0], [1], [0, 0, 1, 1], [], []>} : vector<8x128xf32>, vector<128x128xf32>, vector<8x128xf32> -> vector<8x128xf32>
    %145 = arith.addf %142, %144 : vector<8x128xf32>
    %cst_123 = arith.constant -1.000000e+00 : f32
    %146 = vector.broadcast %cst_123 : f32 to vector<8x1xf32>
    %147 = arith.addf %4, %146 : vector<8x1xf32>
    %148 = vector.broadcast %147 : vector<8x1xf32> to vector<8x128xf32>
    %149 = arith.addf %145, %148 : vector<8x128xf32>
    %cst_124 = arith.constant 0.000000e+00 : f32
    %150 = vector.broadcast %cst_124 : f32 to vector<8x128xf32>
    %151 = arith.maximumf %149, %150 : vector<8x128xf32>
    %c0_125 = arith.constant 0 : index
    %c0_126 = arith.constant 0 : index
    %152 = vector.load %arg5[%c0_125, %c0_126] : memref<256x256xf32, #tpu.memory_space<vmem>>, vector<8x128xf32>
    tpu.vector_store %arg5[%c0_125, %c0_126], %151 {strides = array<i32>} : memref<256x256xf32, #tpu.memory_space<vmem>>, vector<8x128xf32>,
    %c127_i32 = arith.constant 127 : i32
    %153 = tpu.dynamic_rotate %151 by %c127_i32 dim 1 : vector<8x128xf32>, i32 -> vector<8x128xf32>
    %c8_127 = arith.constant 8 : index
    %c0_128 = arith.constant 0 : index
    %154 = vector.load %arg5[%c8_127, %c0_128] : memref<256x256xf32, #tpu.memory_space<vmem>>, vector<8x128xf32>
    tpu.vector_store %arg5[%c8_127, %c0_128], %153 {strides = array<i32>} : memref<256x256xf32, #tpu.memory_space<vmem>>, vector<8x128xf32>,
    %c126_i32 = arith.constant 126 : i32
    %155 = tpu.dynamic_rotate %151 by %c126_i32 dim 1 : vector<8x128xf32>, i32 -> vector<8x128xf32>
    %c16_129 = arith.constant 16 : index
    %c0_130 = arith.constant 0 : index
    %156 = vector.load %arg5[%c16_129, %c0_130] : memref<256x256xf32, #tpu.memory_space<vmem>>, vector<8x128xf32>
    tpu.vector_store %arg5[%c16_129, %c0_130], %155 {strides = array<i32>} : memref<256x256xf32, #tpu.memory_space<vmem>>, vector<8x128xf32>,
    %c125_i32 = arith.constant 125 : i32
    %157 = tpu.dynamic_rotate %151 by %c125_i32 dim 1 : vector<8x128xf32>, i32 -> vector<8x128xf32>
    %c24_131 = arith.constant 24 : index
    %c0_132 = arith.constant 0 : index
    %158 = vector.load %arg5[%c24_131, %c0_132] : memref<256x256xf32, #tpu.memory_space<vmem>>, vector<8x128xf32>
    tpu.vector_store %arg5[%c24_131, %c0_132], %157 {strides = array<i32>} : memref<256x256xf32, #tpu.memory_space<vmem>>, vector<8x128xf32>,
    %c124_i32 = arith.constant 124 : i32
    %159 = tpu.dynamic_rotate %151 by %c124_i32 dim 1 : vector<8x128xf32>, i32 -> vector<8x128xf32>
    %c32_133 = arith.constant 32 : index
    %c0_134 = arith.constant 0 : index
    %160 = vector.load %arg5[%c32_133, %c0_134] : memref<256x256xf32, #tpu.memory_space<vmem>>, vector<8x128xf32>
    tpu.vector_store %arg5[%c32_133, %c0_134], %159 {strides = array<i32>} : memref<256x256xf32, #tpu.memory_space<vmem>>, vector<8x128xf32>,
    %c112_i32 = arith.constant 112 : i32
    %161 = tpu.dynamic_rotate %151 by %c112_i32 dim 1 : vector<8x128xf32>, i32 -> vector<8x128xf32>
    %c40_135 = arith.constant 40 : index
    %c0_136 = arith.constant 0 : index
    %162 = vector.load %arg5[%c40_135, %c0_136] : memref<256x256xf32, #tpu.memory_space<vmem>>, vector<8x128xf32>
    tpu.vector_store %arg5[%c40_135, %c0_136], %161 {strides = array<i32>} : memref<256x256xf32, #tpu.memory_space<vmem>>, vector<8x128xf32>,
    %c111_i32 = arith.constant 111 : i32
    %163 = tpu.dynamic_rotate %151 by %c111_i32 dim 1 : vector<8x128xf32>, i32 -> vector<8x128xf32>
    %c48_137 = arith.constant 48 : index
    %c0_138 = arith.constant 0 : index
    %164 = vector.load %arg5[%c48_137, %c0_138] : memref<256x256xf32, #tpu.memory_space<vmem>>, vector<8x128xf32>
    tpu.vector_store %arg5[%c48_137, %c0_138], %163 {strides = array<i32>} : memref<256x256xf32, #tpu.memory_space<vmem>>, vector<8x128xf32>,
    %c110_i32 = arith.constant 110 : i32
    %165 = tpu.dynamic_rotate %151 by %c110_i32 dim 1 : vector<8x128xf32>, i32 -> vector<8x128xf32>
    %c56_139 = arith.constant 56 : index
    %c0_140 = arith.constant 0 : index
    %166 = vector.load %arg5[%c56_139, %c0_140] : memref<256x256xf32, #tpu.memory_space<vmem>>, vector<8x128xf32>
    tpu.vector_store %arg5[%c56_139, %c0_140], %165 {strides = array<i32>} : memref<256x256xf32, #tpu.memory_space<vmem>>, vector<8x128xf32>,
    %c109_i32 = arith.constant 109 : i32
    %167 = tpu.dynamic_rotate %151 by %c109_i32 dim 1 : vector<8x128xf32>, i32 -> vector<8x128xf32>
    %c64_141 = arith.constant 64 : index
    %c0_142 = arith.constant 0 : index
    %168 = vector.load %arg5[%c64_141, %c0_142] : memref<256x256xf32, #tpu.memory_space<vmem>>, vector<8x128xf32>
    tpu.vector_store %arg5[%c64_141, %c0_142], %167 {strides = array<i32>} : memref<256x256xf32, #tpu.memory_space<vmem>>, vector<8x128xf32>,
    %c108_i32 = arith.constant 108 : i32
    %169 = tpu.dynamic_rotate %151 by %c108_i32 dim 1 : vector<8x128xf32>, i32 -> vector<8x128xf32>
    %c72_143 = arith.constant 72 : index
    %c0_144 = arith.constant 0 : index
    %170 = vector.load %arg5[%c72_143, %c0_144] : memref<256x256xf32, #tpu.memory_space<vmem>>, vector<8x128xf32>
    tpu.vector_store %arg5[%c72_143, %c0_144], %169 {strides = array<i32>} : memref<256x256xf32, #tpu.memory_space<vmem>>, vector<8x128xf32>,
    %c96_i32 = arith.constant 96 : i32
    %171 = tpu.dynamic_rotate %151 by %c96_i32 dim 1 : vector<8x128xf32>, i32 -> vector<8x128xf32>
    %c80_145 = arith.constant 80 : index
    %c0_146 = arith.constant 0 : index
    %172 = vector.load %arg5[%c80_145, %c0_146] : memref<256x256xf32, #tpu.memory_space<vmem>>, vector<8x128xf32>
    tpu.vector_store %arg5[%c80_145, %c0_146], %171 {strides = array<i32>} : memref<256x256xf32, #tpu.memory_space<vmem>>, vector<8x128xf32>,
    %c95_i32 = arith.constant 95 : i32
    %173 = tpu.dynamic_rotate %151 by %c95_i32 dim 1 : vector<8x128xf32>, i32 -> vector<8x128xf32>
    %c88_147 = arith.constant 88 : index
    %c0_148 = arith.constant 0 : index
    %174 = vector.load %arg5[%c88_147, %c0_148] : memref<256x256xf32, #tpu.memory_space<vmem>>, vector<8x128xf32>
    tpu.vector_store %arg5[%c88_147, %c0_148], %173 {strides = array<i32>} : memref<256x256xf32, #tpu.memory_space<vmem>>, vector<8x128xf32>,
    %c94_i32 = arith.constant 94 : i32
    %175 = tpu.dynamic_rotate %151 by %c94_i32 dim 1 : vector<8x128xf32>, i32 -> vector<8x128xf32>
    %c96_149 = arith.constant 96 : index
    %c0_150 = arith.constant 0 : index
    %176 = vector.load %arg5[%c96_149, %c0_150] : memref<256x256xf32, #tpu.memory_space<vmem>>, vector<8x128xf32>
    tpu.vector_store %arg5[%c96_149, %c0_150], %175 {strides = array<i32>} : memref<256x256xf32, #tpu.memory_space<vmem>>, vector<8x128xf32>,
    %c93_i32 = arith.constant 93 : i32
    %177 = tpu.dynamic_rotate %151 by %c93_i32 dim 1 : vector<8x128xf32>, i32 -> vector<8x128xf32>
    %c104_151 = arith.constant 104 : index
    %c0_152 = arith.constant 0 : index
    %178 = vector.load %arg5[%c104_151, %c0_152] : memref<256x256xf32, #tpu.memory_space<vmem>>, vector<8x128xf32>
    tpu.vector_store %arg5[%c104_151, %c0_152], %177 {strides = array<i32>} : memref<256x256xf32, #tpu.memory_space<vmem>>, vector<8x128xf32>,
    %c92_i32 = arith.constant 92 : i32
    %179 = tpu.dynamic_rotate %151 by %c92_i32 dim 1 : vector<8x128xf32>, i32 -> vector<8x128xf32>
    %c112_153 = arith.constant 112 : index
    %c0_154 = arith.constant 0 : index
    %180 = vector.load %arg5[%c112_153, %c0_154] : memref<256x256xf32, #tpu.memory_space<vmem>>, vector<8x128xf32>
    tpu.vector_store %arg5[%c112_153, %c0_154], %179 {strides = array<i32>} : memref<256x256xf32, #tpu.memory_space<vmem>>, vector<8x128xf32>,
    %c80_i32 = arith.constant 80 : i32
    %181 = tpu.dynamic_rotate %151 by %c80_i32 dim 1 : vector<8x128xf32>, i32 -> vector<8x128xf32>
    %c120_155 = arith.constant 120 : index
    %c0_156 = arith.constant 0 : index
    %182 = vector.load %arg5[%c120_155, %c0_156] : memref<256x256xf32, #tpu.memory_space<vmem>>, vector<8x128xf32>
    tpu.vector_store %arg5[%c120_155, %c0_156], %181 {strides = array<i32>} : memref<256x256xf32, #tpu.memory_space<vmem>>, vector<8x128xf32>,
    %c79_i32 = arith.constant 79 : i32
    %183 = tpu.dynamic_rotate %151 by %c79_i32 dim 1 : vector<8x128xf32>, i32 -> vector<8x128xf32>
    %c128_157 = arith.constant 128 : index
    %c0_158 = arith.constant 0 : index
    %184 = vector.load %arg5[%c128_157, %c0_158] : memref<256x256xf32, #tpu.memory_space<vmem>>, vector<8x128xf32>
    tpu.vector_store %arg5[%c128_157, %c0_158], %183 {strides = array<i32>} : memref<256x256xf32, #tpu.memory_space<vmem>>, vector<8x128xf32>,
    %c78_i32 = arith.constant 78 : i32
    %185 = tpu.dynamic_rotate %151 by %c78_i32 dim 1 : vector<8x128xf32>, i32 -> vector<8x128xf32>
    %c136_159 = arith.constant 136 : index
    %c0_160 = arith.constant 0 : index
    %186 = vector.load %arg5[%c136_159, %c0_160] : memref<256x256xf32, #tpu.memory_space<vmem>>, vector<8x128xf32>
    tpu.vector_store %arg5[%c136_159, %c0_160], %185 {strides = array<i32>} : memref<256x256xf32, #tpu.memory_space<vmem>>, vector<8x128xf32>,
    %c77_i32 = arith.constant 77 : i32
    %187 = tpu.dynamic_rotate %151 by %c77_i32 dim 1 : vector<8x128xf32>, i32 -> vector<8x128xf32>
    %c144_161 = arith.constant 144 : index
    %c0_162 = arith.constant 0 : index
    %188 = vector.load %arg5[%c144_161, %c0_162] : memref<256x256xf32, #tpu.memory_space<vmem>>, vector<8x128xf32>
    tpu.vector_store %arg5[%c144_161, %c0_162], %187 {strides = array<i32>} : memref<256x256xf32, #tpu.memory_space<vmem>>, vector<8x128xf32>,
    %c76_i32 = arith.constant 76 : i32
    %189 = tpu.dynamic_rotate %151 by %c76_i32 dim 1 : vector<8x128xf32>, i32 -> vector<8x128xf32>
    %c152_163 = arith.constant 152 : index
    %c0_164 = arith.constant 0 : index
    %190 = vector.load %arg5[%c152_163, %c0_164] : memref<256x256xf32, #tpu.memory_space<vmem>>, vector<8x128xf32>
    tpu.vector_store %arg5[%c152_163, %c0_164], %189 {strides = array<i32>} : memref<256x256xf32, #tpu.memory_space<vmem>>, vector<8x128xf32>,
    %c64_i32 = arith.constant 64 : i32
    %191 = tpu.dynamic_rotate %151 by %c64_i32 dim 1 : vector<8x128xf32>, i32 -> vector<8x128xf32>
    %c160_165 = arith.constant 160 : index
    %c0_166 = arith.constant 0 : index
    %192 = vector.load %arg5[%c160_165, %c0_166] : memref<256x256xf32, #tpu.memory_space<vmem>>, vector<8x128xf32>
    tpu.vector_store %arg5[%c160_165, %c0_166], %191 {strides = array<i32>} : memref<256x256xf32, #tpu.memory_space<vmem>>, vector<8x128xf32>,
    %c63_i32 = arith.constant 63 : i32
    %193 = tpu.dynamic_rotate %151 by %c63_i32 dim 1 : vector<8x128xf32>, i32 -> vector<8x128xf32>
    %c168_167 = arith.constant 168 : index
    %c0_168 = arith.constant 0 : index
    %194 = vector.load %arg5[%c168_167, %c0_168] : memref<256x256xf32, #tpu.memory_space<vmem>>, vector<8x128xf32>
    tpu.vector_store %arg5[%c168_167, %c0_168], %193 {strides = array<i32>} : memref<256x256xf32, #tpu.memory_space<vmem>>, vector<8x128xf32>,
    %c62_i32 = arith.constant 62 : i32
    %195 = tpu.dynamic_rotate %151 by %c62_i32 dim 1 : vector<8x128xf32>, i32 -> vector<8x128xf32>
    %c176_169 = arith.constant 176 : index
    %c0_170 = arith.constant 0 : index
    %196 = vector.load %arg5[%c176_169, %c0_170] : memref<256x256xf32, #tpu.memory_space<vmem>>, vector<8x128xf32>
    tpu.vector_store %arg5[%c176_169, %c0_170], %195 {strides = array<i32>} : memref<256x256xf32, #tpu.memory_space<vmem>>, vector<8x128xf32>,
    %c61_i32 = arith.constant 61 : i32
    %197 = tpu.dynamic_rotate %151 by %c61_i32 dim 1 : vector<8x128xf32>, i32 -> vector<8x128xf32>
    %c184_171 = arith.constant 184 : index
    %c0_172 = arith.constant 0 : index
    %198 = vector.load %arg5[%c184_171, %c0_172] : memref<256x256xf32, #tpu.memory_space<vmem>>, vector<8x128xf32>
    tpu.vector_store %arg5[%c184_171, %c0_172], %197 {strides = array<i32>} : memref<256x256xf32, #tpu.memory_space<vmem>>, vector<8x128xf32>,
    %c60_i32 = arith.constant 60 : i32
    %199 = tpu.dynamic_rotate %151 by %c60_i32 dim 1 : vector<8x128xf32>, i32 -> vector<8x128xf32>
    %c192_173 = arith.constant 192 : index
    %c0_174 = arith.constant 0 : index
    %200 = vector.load %arg5[%c192_173, %c0_174] : memref<256x256xf32, #tpu.memory_space<vmem>>, vector<8x128xf32>
    tpu.vector_store %arg5[%c192_173, %c0_174], %199 {strides = array<i32>} : memref<256x256xf32, #tpu.memory_space<vmem>>, vector<8x128xf32>,
    %c0_175 = arith.constant 0 : index
    %c0_176 = arith.constant 0 : index
    %201 = vector.load %arg5[%c0_175, %c0_176] : memref<256x256xf32, #tpu.memory_space<vmem>>, vector<128x128xf32>
    %cst_177 = arith.constant dense<0.000000e+00> : vector<8x128xf32>
    %202 = tpu.matmul %2, %201, %cst_177 {dimension_numbers = #tpu.dot_dimension_numbers<[1], [0], [0], [1], [0, 0, 1, 1], [], []>} : vector<8x128xf32>, vector<128x128xf32>, vector<8x128xf32> -> vector<8x128xf32>
    %c128_178 = arith.constant 128 : index
    %c0_179 = arith.constant 0 : index
    %203 = vector.load %arg5[%c128_178, %c0_179] : memref<256x256xf32, #tpu.memory_space<vmem>>, vector<128x128xf32>
    %cst_180 = arith.constant dense<0.000000e+00> : vector<8x128xf32>
    %204 = tpu.matmul %3, %203, %cst_180 {dimension_numbers = #tpu.dot_dimension_numbers<[1], [0], [0], [1], [0, 0, 1, 1], [], []>} : vector<8x128xf32>, vector<128x128xf32>, vector<8x128xf32> -> vector<8x128xf32>
    %205 = arith.addf %202, %204 : vector<8x128xf32>
    %cst_181 = arith.constant 2.500000e-01 : f32
    %206 = vector.broadcast %cst_181 : f32 to vector<8x1xf32>
    %207 = arith.addf %4, %206 : vector<8x1xf32>
    %208 = vector.broadcast %207 : vector<8x1xf32> to vector<8x128xf32>
    %209 = arith.addf %205, %208 : vector<8x128xf32>
    %cst_182 = arith.constant 0.000000e+00 : f32
    %210 = vector.broadcast %cst_182 : f32 to vector<8x128xf32>
    %211 = arith.maximumf %209, %210 : vector<8x128xf32>
    %c0_183 = arith.constant 0 : index
    %c0_184 = arith.constant 0 : index
    %c0_185 = arith.constant 0 : index
    %212 = vector.load %arg4[%c0_183, %c0_184, %c0_185] : memref<1x8x128xf32, #tpu.memory_space<vmem>>, vector<1x8x128xf32>
    %213 = vector.shape_cast %212 : vector<1x8x128xf32> to vector<8x128xf32>
    %214 = vector.shape_cast %211 : vector<8x128xf32> to vector<1x8x128xf32>
    tpu.vector_store %arg4[%c0_183, %c0_184, %c0_185], %214 {strides = array<i32>} : memref<1x8x128xf32, #tpu.memory_space<vmem>>, vector<1x8x128xf32>,
    return
  }
  func.func @transform_0(%arg0: i32) -> (i32, i32, i32) {
    %c0_i32 = arith.constant 0 : i32
    %c0_i32_0 = arith.constant 0 : i32
    %c0_i32_1 = arith.constant 0 : i32
    return %arg0, %c0_i32, %c0_i32_0 : i32, i32, i32
  }
  func.func @transform_1(%arg0: i32) -> (i32, i32) {
    %c0_i32 = arith.constant 0 : i32
    %c0_i32_0 = arith.constant 0 : i32
    %c0_i32_1 = arith.constant 0 : i32
    return %c0_i32, %c0_i32_0 : i32, i32
  }
  func.func @transform_2(%arg0: i32) -> (i32, i32) {
    %c0_i32 = arith.constant 0 : i32
    %c0_i32_0 = arith.constant 0 : i32
    %c0_i32_1 = arith.constant 0 : i32
    return %c0_i32, %c0_i32_0 : i32, i32
  }
  func.func @transform_3(%arg0: i32) -> (i32, i32, i32) {
    %c0_i32 = arith.constant 0 : i32
    %c0_i32_0 = arith.constant 0 : i32
    %c0_i32_1 = arith.constant 0 : i32
    return %arg0, %c0_i32, %c0_i32_0 : i32, i32, i32
  }
}

</mosaic_0001>

<llo_original>
// kernel: model_forward.1
$region0: #{model_forward.1}
  #allocation0 [shape = 'u32[]', space=smem, size = 0x4, offset = 0x4, fixed_abs, tag = 'smem constant byte address 0x4 - core index']
  #allocation1 [shape = 'u32[144,128]{1,0:T(1,128)}', space=vmem, size = 0x12000, scoped, tag = 'internal scratch']
  #allocation2 [shape = 'f32[256,256]{1,0:T(8,128)}', space=vmem, size = 0x40000, scoped, tag = 'scratch operand']
  %s0 = inlined_call_operand.vmem [shape: f32[2,8,256], index: 0, kind: input, shape index: {}]
  %s1 = inlined_call_operand.vmem [shape: f32[8,256], index: 1, kind: input, shape index: {}]
  %s2 = inlined_call_operand.vmem [shape: f32[8,1], index: 2, kind: input, shape index: {}]
  %s3 = inlined_call_operand.vmem [shape: f32[2,8,128], index: 3, kind: output, shape index: {}]
  %s4 = sld [smem:[#allocation0]]
  $region45: #{model_forward.1} parent=0
    _
  %s6 = ssub.s32 1, %s4
  %s7 = scalar_select 0, %s6, %s4
  loop: start=0, step=1, limit=4
  $region2: #{model_forward.1} parent=0 // loop_pre_header
    _
  $region3: #{model_forward.1} parent=0 // loop_header
    %s9 = sphi 0, %s13
    %p10 = scmp.ge.s32.totalorder %s9, 4
    %s19 = sphi 0, %s21
    %s22 = sphi 0, %s19
    %s23 = sphi 0, %s22
    %s39 = sphi 0, %s23
    %s43 = sphi 0, %s43
    %s45 = sphi 0, %s43
    %s46 = sphi 0, %s45
    %s60 = sphi 0, %s46
    %s64 = sphi 0, %s64
    %s66 = sphi 0, %s64
    %s67 = sphi 0, %s66
    %s81 = sphi 0, %s67
    %s87 = sphi 0, %s89
    %s90 = sphi 0, %s87
    %s91 = sphi 0, %s90
    %s107 = sphi 0, %s91
  $region4: #{model_forward.1} parent=0 // loop_header_branch
    %12 = sbr.rel (%p10) target = $region8
  $region5: #{model_forward.1} parent=0 // loop_body
    %s14 = ssub.s32 %s9, 1
    %s15 = ssub.s32 %s9, 2
    %s16 = sadd.s32 %s9, 1
    %s17 = ssub.s32 %s9, %s16
    %p18 = scmp.eq.s32.totalorder %s17, 0
    %s20 = sadd.s32 %s19, 1
    %s21 = scalar_select %p18, %s19, %s20
    %p24 = pneg %p18
    %p25 = scmp.eq.s32.totalorder %s9, 1
    %p26 = por %p24, %p25
    %p27 = scmp.ne.s32.totalorder %s19, %s22
    %p28 = scmp.eq.s32.totalorder %s9, 0
    %p29 = por %p27, %p28
    %p30 = scmp.ne.s32.totalorder %s19, %s22
    %p31 = scmp.eq.s32.totalorder %s14, 1
    %p32 = por %p30, %p31
    %p33 = scmp.ne.s32.totalorder %s22, %s23
    %p34 = scmp.eq.s32.totalorder %s14, 0
    %p35 = por %p33, %p34
    %p36 = scmp.ne.s32.totalorder %s22, %s23
    %p37 = scmp.eq.s32.totalorder %s15, 1
    %p38 = por %p36, %p37
    %p40 = scmp.ne.s32.totalorder %s23, %s39
    %p41 = scmp.eq.s32.totalorder %s15, 0
    %p42 = por %p40, %p41
    %s44 = sadd.s32 %s43, 1
    %p47 = scmp.eq.s32.totalorder %s9, 1
    %p48 = scmp.ne.s32.totalorder %s43, %s45
    %p49 = scmp.eq.s32.totalorder %s9, 0
    %p50 = por %p48, %p49
    %p51 = scmp.ne.s32.totalorder %s43, %s45
    %p52 = scmp.eq.s32.totalorder %s14, 1
    %p53 = por %p51, %p52
    %p54 = scmp.ne.s32.totalorder %s45, %s46
    %p55 = scmp.eq.s32.totalorder %s14, 0
    %p56 = por %p54, %p55
    %p57 = scmp.ne.s32.totalorder %s45, %s46
    %p58 = scmp.eq.s32.totalorder %s15, 1
    %p59 = por %p57, %p58
    %p61 = scmp.ne.s32.totalorder %s46, %s60
    %p62 = scmp.eq.s32.totalorder %s15, 0
    %p63 = por %p61, %p62
    %s65 = sadd.s32 %s64, 1
    %p68 = scmp.eq.s32.totalorder %s9, 1
    %p69 = scmp.ne.s32.totalorder %s64, %s66
    %p70 = scmp.eq.s32.totalorder %s9, 0
    %p71 = por %p69, %p70
    %p72 = scmp.ne.s32.totalorder %s64, %s66
    %p73 = scmp.eq.s32.totalorder %s14, 1
    %p74 = por %p72, %p73
    %p75 = scmp.ne.s32.totalorder %s66, %s67
    %p76 = scmp.eq.s32.totalorder %s14, 0
    %p77 = por %p75, %p76
    %p78 = scmp.ne.s32.totalorder %s66, %s67
    %p79 = scmp.eq.s32.totalorder %s15, 1
    %p80 = por %p78, %p79
    %p82 = scmp.ne.s32.totalorder %s67, %s81
    %p83 = scmp.eq.s32.totalorder %s15, 0
    %p84 = por %p82, %p83
    %s85 = ssub.s32 %s9, %s16
    %p86 = scmp.eq.s32.totalorder %s85, 0
    %s88 = sadd.s32 %s87, 1
    %s89 = scalar_select %p86, %s87, %s88
    %p92 = pneg %p86
    %p93 = scmp.eq.s32.totalorder %s9, 1
    %p94 = por %p92, %p93
    %p95 = scmp.ne.s32.totalorder %s87, %s90
    %p96 = scmp.eq.s32.totalorder %s9, 0
    %p97 = por %p95, %p96
    %p98 = scmp.ne.s32.totalorder %s87, %s90
    %p99 = scmp.eq.s32.totalorder %s14, 1
    %p100 = por %p98, %p99
    %p101 = scmp.ne.s32.totalorder %s90, %s91
    %p102 = scmp.eq.s32.totalorder %s14, 0
    %p103 = por %p101, %p102
    %p104 = scmp.ne.s32.totalorder %s90, %s91
    %p105 = scmp.eq.s32.totalorder %s15, 1
    %p106 = por %p104, %p105
    %p108 = scmp.ne.s32.totalorder %s91, %s107
    %p109 = scmp.eq.s32.totalorder %s15, 0
    %p110 = por %p108, %p109
    %p111 = scmp.le.s32.totalorder 1, %s9
    %p112 = scmp.lt.s32.totalorder %s9, 3
    %p113 = pnand %p111, %p112
    %p114 = pneg %p113
    // Predicated region
    $region9: #{model_forward.1} parent=5 // pred_check
      _
    $region10: #{model_forward.1} parent=5 // pred_check_branch
      %116 = sbr.rel (%p113) target = $region12
    $region11: #{model_forward.1} parent=5 // pred_region
      %s117 = ssub.s32 %s9, 1
      // Predicated region
      $region13: #{model_forward.1} parent=11 // pred_check
        %p118 = pneg %p56
      $region14: #{model_forward.1} parent=11 // pred_check_branch
        %120 = sbr.rel (%p118) target = $region16
      $region15: #{model_forward.1} parent=11 // pred_region
        _
      $region16: #{model_forward.1} parent=11 // pred_fallthru
        _
      // Predicated region
      $region17: #{model_forward.1} parent=11 // pred_check
        %p121 = pneg %p77
      $region18: #{model_forward.1} parent=11 // pred_check_branch
        %123 = sbr.rel (%p121) target = $region20
      $region19: #{model_forward.1} parent=11 // pred_region
        _
      $region20: #{model_forward.1} parent=11 // pred_fallthru
        _
    $region12: #{model_forward.1} parent=5 // pred_fallthru
      _
    %p124 = scmp.lt.s32.totalorder %s9, 2
    // Predicated region
    $region21: #{model_forward.1} parent=5 // pred_check
      %p125 = pneg %p124
    $region22: #{model_forward.1} parent=5 // pred_check_branch
      %127 = sbr.rel (%p125) target = $region24
    $region23: #{model_forward.1} parent=5 // pred_region
      // Predicated region
      $region25: #{model_forward.1} parent=23 // pred_check
        %p128 = pneg %p29
      $region26: #{model_forward.1} parent=23 // pred_check_branch
        %130 = sbr.rel (%p128) target = $region28
      $region27: #{model_forward.1} parent=23 // pred_region
        %p131 = scmp.lt.s32.totalorder %s9, 1
        %s132 = scalar_select %p131, %s9, 1
        %s133 = smul.addr %s132, 2
        %s134 = smul.addr %s133, 8
        %s135 = scalar_lea.vmem %s0, %s134
      $region28: #{model_forward.1} parent=23 // pred_fallthru
        _
    $region24: #{model_forward.1} parent=5 // pred_fallthru
      _
    %p136 = scmp.le.s32.totalorder 1, %s9
    %p137 = scmp.lt.s32.totalorder %s9, 3
    %p138 = pnand %p136, %p137
    %p139 = pneg %p138
    // Predicated region
    $region29: #{model_forward.1} parent=5 // pred_check
      _
    $region30: #{model_forward.1} parent=5 // pred_check_branch
      %141 = sbr.rel (%p138) target = $region32
    $region31: #{model_forward.1} parent=5 // pred_region
      %s142 = ssub.s32 %s9, 1
      %p143 = scmp.lt.s32.totalorder %s14, 1
      %s144 = scalar_select %p143, %s14, 1
      %s145 = smul.addr %s144, 2
      %s146 = smul.addr %s145, 8
      %s147 = scalar_lea.vmem %s0, %s146
      %p148 = pneg %p35
      %p149 = pneg %p32
      %p150 = pneg %p56
      %p151 = pneg %p53
      %p152 = pneg %p77
      %p153 = pneg %p74
      %p154 = pneg %p103
      %p155 = pneg %p100
      %p156 = scmp.lt.s32.totalorder %s14, 1
      %s157 = scalar_select %p156, %s14, 1
      %s158 = smul.addr %s157, 8
      %s159 = scalar_lea.vmem %s3, %s158
      %p160 = scmp.lt.s32.totalorder %s14, 1
      %s161 = scalar_select %p160, %s14, 1
      %s162 = smul.addr %s161, 2
      %s163 = smul.addr %s162, 8
      %s164 = scalar_lea.vmem %s0, %s163
      %p165 = scmp.lt.s32.totalorder %s14, 1
      %s166 = scalar_select %p165, %s14, 1
      %s167 = smul.addr %s166, 8
      %s168 = scalar_lea.vmem %s3, %s167
      %169 = vst [vmem:[#allocation2 + $0x190] sm:$0xff] 0.0
      %170 = vst [vmem:[#allocation2 + $0x198] sm:$0xff] 0.0
      %171 = vst [vmem:[#allocation2 + $0x1a0] sm:$0xff] 0.0
      %172 = vst [vmem:[#allocation2 + $0x1a8] sm:$0xff] 0.0
      %173 = vst [vmem:[#allocation2 + $0x1b0] sm:$0xff] 0.0
      %174 = vst [vmem:[#allocation2 + $0x1b8] sm:$0xff] 0.0
      %175 = vst [vmem:[#allocation2 + $0x1c0] sm:$0xff] 0.0
      %176 = vst [vmem:[#allocation2 + $0x1c8] sm:$0xff] 0.0
      %177 = vst [vmem:[#allocation2 + $0x1d0] sm:$0xff] 0.0
      %178 = vst [vmem:[#allocation2 + $0x1d8] sm:$0xff] 0.0
      %179 = vst [vmem:[#allocation2 + $0x1e0] sm:$0xff] 0.0
      %180 = vst [vmem:[#allocation2 + $0x1e8] sm:$0xff] 0.0
      %181 = vst [vmem:[#allocation2 + $0x1f0] sm:$0xff] 0.0
      %182 = vst [vmem:[#allocation2 + $0x1f8] sm:$0xff] 0.0
      %v183 = vld [vmem:[%s1] sm:$0xff]
      %v184 = vld [vmem:[%s1 + $0x8] sm:$0xff]
      %v185 = vld [vmem:[%s2] sm:$0xff]
      %v186 = vld [vmem:[%s164] sm:$0xff]
      %v187 = vld [vmem:[%s164 + $0x8] sm:$0xff]
      %188 = vst [vmem:[#allocation2] sm:$0xff] %v186
      %189 = vst [vmem:[#allocation2 + $0x8] sm:$0xff] %v187
      %190 = vrot.lane.b32.xlu0 %v186, 127
      %v191 = vpop.permute.xlu0 %190
      %192 = vrot.lane.b32.xlu0 %v187, 127
      %v193 = vpop.permute.xlu0 %192
      %v194 = vlaneseq
      %v195 = vand.u32 %v194, 127
      %vm196 = vcmp.lt.s32.totalorder %v195, 127
      %v197 = vsel %vm196, %v191, %v193
      %v198 = vsel %vm196, %v193, %v191
      %199 = vst [vmem:[#allocation2 + $0x10] sm:$0xff] %v197
      %200 = vst [vmem:[#allocation2 + $0x18] sm:$0xff] %v198
      %201 = vrot.lane.b32.xlu0 %v186, 126
      %v202 = vpop.permute.xlu0 %201
      %203 = vrot.lane.b32.xlu0 %v187, 126
      %v204 = vpop.permute.xlu0 %203
      %vm205 = vcmp.lt.s32.totalorder %v195, 126
      %v206 = vsel %vm205, %v202, %v204
      %v207 = vsel %vm205, %v204, %v202
      %208 = vst [vmem:[#allocation2 + $0x20] sm:$0xff] %v206
      %209 = vst [vmem:[#allocation2 + $0x28] sm:$0xff] %v207
      %210 = vrot.lane.b32.xlu0 %v186, 125
      %v211 = vpop.permute.xlu0 %210
      %212 = vrot.lane.b32.xlu0 %v187, 125
      %v213 = vpop.permute.xlu0 %212
      %vm214 = vcmp.lt.s32.totalorder %v195, 125
      %v215 = vsel %vm214, %v211, %v213
      %v216 = vsel %vm214, %v213, %v211
      %217 = vst [vmem:[#allocation2 + $0x30] sm:$0xff] %v215
      %218 = vst [vmem:[#allocation2 + $0x38] sm:$0xff] %v216
      %219 = vrot.lane.b32.xlu0 %v186, 124
      %v220 = vpop.permute.xlu0 %219
      %221 = vrot.lane.b32.xlu0 %v187, 124
      %v222 = vpop.permute.xlu0 %221
      %vm223 = vcmp.lt.s32.totalorder %v195, 124
      %v224 = vsel %vm223, %v220, %v222
      %v225 = vsel %vm223, %v222, %v220
      %226 = vst [vmem:[#allocation2 + $0x40] sm:$0xff] %v224
      %227 = vst [vmem:[#allocation2 + $0x48] sm:$0xff] %v225
      %228 = vrot.lane.b32.xlu0 %v186, 112
      %v229 = vpop.permute.xlu0 %228
      %230 = vrot.lane.b32.xlu0 %v187, 112
      %v231 = vpop.permute.xlu0 %230
      %vm232 = vcmp.lt.s32.totalorder %v195, 112
      %v233 = vsel %vm232, %v229, %v231
      %v234 = vsel %vm232, %v231, %v229
      %235 = vst [vmem:[#allocation2 + $0x50] sm:$0xff] %v233
      %236 = vst [vmem:[#allocation2 + $0x58] sm:$0xff] %v234
      %237 = vrot.lane.b32.xlu0 %v186, 111
      %v238 = vpop.permute.xlu0 %237
      %239 = vrot.lane.b32.xlu0 %v187, 111
      %v240 = vpop.permute.xlu0 %239
      %vm241 = vcmp.lt.s32.totalorder %v195, 111
      %v242 = vsel %vm241, %v238, %v240
      %v243 = vsel %vm241, %v240, %v238
      %244 = vst [vmem:[#allocation2 + $0x60] sm:$0xff] %v242
      %245 = vst [vmem:[#allocation2 + $0x68] sm:$0xff] %v243
      %246 = vrot.lane.b32.xlu0 %v186, 110
      %v247 = vpop.permute.xlu0 %246
      %248 = vrot.lane.b32.xlu0 %v187, 110
      %v249 = vpop.permute.xlu0 %248
      %vm250 = vcmp.lt.s32.totalorder %v195, 110
      %v251 = vsel %vm250, %v247, %v249
      %v252 = vsel %vm250, %v249, %v247
      %253 = vst [vmem:[#allocation2 + $0x70] sm:$0xff] %v251
      %254 = vst [vmem:[#allocation2 + $0x78] sm:$0xff] %v252
      %255 = vrot.lane.b32.xlu0 %v186, 109
      %v256 = vpop.permute.xlu0 %255
      %257 = vrot.lane.b32.xlu0 %v187, 109
      %v258 = vpop.permute.xlu0 %257
      %vm259 = vcmp.lt.s32.totalorder %v195, 109
      %v260 = vsel %vm259, %v256, %v258
      %v261 = vsel %vm259, %v258, %v256
      %262 = vst [vmem:[#allocation2 + $0x80] sm:$0xff] %v260
      %263 = vst [vmem:[#allocation2 + $0x88] sm:$0xff] %v261
      %264 = vrot.lane.b32.xlu0 %v186, 108
      %v265 = vpop.permute.xlu0 %264
      %266 = vrot.lane.b32.xlu0 %v187, 108
      %v267 = vpop.permute.xlu0 %266
      %vm268 = vcmp.lt.s32.totalorder %v195, 108
      %v269 = vsel %vm268, %v265, %v267
      %v270 = vsel %vm268, %v267, %v265
      %271 = vst [vmem:[#allocation2 + $0x90] sm:$0xff] %v269
      %272 = vst [vmem:[#allocation2 + $0x98] sm:$0xff] %v270
      %273 = vrot.lane.b32.xlu0 %v186, 96
      %v274 = vpop.permute.xlu0 %273
      %275 = vrot.lane.b32.xlu0 %v187, 96
      %v276 = vpop.permute.xlu0 %275
      %vm277 = vcmp.lt.s32.totalorder %v195, 96
      %v278 = vsel %vm277, %v274, %v276
      %v279 = vsel %vm277, %v276, %v274
      %280 = vst [vmem:[#allocation2 + $0xa0] sm:$0xff] %v278
      %281 = vst [vmem:[#allocation2 + $0xa8] sm:$0xff] %v279
      %282 = vrot.lane.b32.xlu0 %v186, 95
      %v283 = vpop.permute.xlu0 %282
      %284 = vrot.lane.b32.xlu0 %v187, 95
      %v285 = vpop.permute.xlu0 %284
      %vm286 = vcmp.lt.s32.totalorder %v195, 95
      %v287 = vsel %vm286, %v283, %v285
      %v288 = vsel %vm286, %v285, %v283
      %289 = vst [vmem:[#allocation2 + $0xb0] sm:$0xff] %v287
      %290 = vst [vmem:[#allocation2 + $0xb8] sm:$0xff] %v288
      %291 = vrot.lane.b32.xlu0 %v186, 94
      %v292 = vpop.permute.xlu0 %291
      %293 = vrot.lane.b32.xlu0 %v187, 94
      %v294 = vpop.permute.xlu0 %293
      %vm295 = vcmp.lt.s32.totalorder %v195, 94
      %v296 = vsel %vm295, %v292, %v294
      %v297 = vsel %vm295, %v294, %v292
      %298 = vst [vmem:[#allocation2 + $0xc0] sm:$0xff] %v296
      %299 = vst [vmem:[#allocation2 + $0xc8] sm:$0xff] %v297
      %300 = vrot.lane.b32.xlu0 %v186, 93
      %v301 = vpop.permute.xlu0 %300
      %302 = vrot.lane.b32.xlu0 %v187, 93
      %v303 = vpop.permute.xlu0 %302
      %vm304 = vcmp.lt.s32.totalorder %v195, 93
      %v305 = vsel %vm304, %v301, %v303
      %v306 = vsel %vm304, %v303, %v301
      %307 = vst [vmem:[#allocation2 + $0xd0] sm:$0xff] %v305
      %308 = vst [vmem:[#allocation2 + $0xd8] sm:$0xff] %v306
      %309 = vrot.lane.b32.xlu0 %v186, 92
      %v310 = vpop.permute.xlu0 %309
      %311 = vrot.lane.b32.xlu0 %v187, 92
      %v312 = vpop.permute.xlu0 %311
      %vm313 = vcmp.lt.s32.totalorder %v195, 92
      %v314 = vsel %vm313, %v310, %v312
      %v315 = vsel %vm313, %v312, %v310
      %316 = vst [vmem:[#allocation2 + $0xe0] sm:$0xff] %v314
      %317 = vst [vmem:[#allocation2 + $0xe8] sm:$0xff] %v315
      %318 = vrot.lane.b32.xlu0 %v186, 80
      %v319 = vpop.permute.xlu0 %318
      %320 = vrot.lane.b32.xlu0 %v187, 80
      %v321 = vpop.permute.xlu0 %320
      %vm322 = vcmp.lt.s32.totalorder %v195, 80
      %v323 = vsel %vm322, %v319, %v321
      %v324 = vsel %vm322, %v321, %v319
      %325 = vst [vmem:[#allocation2 + $0xf0] sm:$0xff] %v323
      %326 = vst [vmem:[#allocation2 + $0xf8] sm:$0xff] %v324
      %327 = vrot.lane.b32.xlu0 %v186, 79
      %v328 = vpop.permute.xlu0 %327
      %329 = vrot.lane.b32.xlu0 %v187, 79
      %v330 = vpop.permute.xlu0 %329
      %vm331 = vcmp.lt.s32.totalorder %v195, 79
      %v332 = vsel %vm331, %v328, %v330
      %v333 = vsel %vm331, %v330, %v328
      %334 = vst [vmem:[#allocation2 + $0x100] sm:$0xff] %v332
      %335 = vst [vmem:[#allocation2 + $0x108] sm:$0xff] %v333
      %336 = vrot.lane.b32.xlu0 %v186, 78
      %v337 = vpop.permute.xlu0 %336
      %338 = vrot.lane.b32.xlu0 %v187, 78
      %v339 = vpop.permute.xlu0 %338
      %vm340 = vcmp.lt.s32.totalorder %v195, 78
      %v341 = vsel %vm340, %v337, %v339
      %v342 = vsel %vm340, %v339, %v337
      %343 = vst [vmem:[#allocation2 + $0x110] sm:$0xff] %v341
      %344 = vst [vmem:[#allocation2 + $0x118] sm:$0xff] %v342
      %345 = vrot.lane.b32.xlu0 %v186, 77
      %v346 = vpop.permute.xlu0 %345
      %347 = vrot.lane.b32.xlu0 %v187, 77
      %v348 = vpop.permute.xlu0 %347
      %vm349 = vcmp.lt.s32.totalorder %v195, 77
      %v350 = vsel %vm349, %v346, %v348
      %v351 = vsel %vm349, %v348, %v346
      %352 = vst [vmem:[#allocation2 + $0x120] sm:$0xff] %v350
      %353 = vst [vmem:[#allocation2 + $0x128] sm:$0xff] %v351
      %354 = vrot.lane.b32.xlu0 %v186, 76
      %v355 = vpop.permute.xlu0 %354
      %356 = vrot.lane.b32.xlu0 %v187, 76
      %v357 = vpop.permute.xlu0 %356
      %vm358 = vcmp.lt.s32.totalorder %v195, 76
      %v359 = vsel %vm358, %v355, %v357
      %v360 = vsel %vm358, %v357, %v355
      %361 = vst [vmem:[#allocation2 + $0x130] sm:$0xff] %v359
      %362 = vst [vmem:[#allocation2 + $0x138] sm:$0xff] %v360
      %363 = vrot.lane.b32.xlu0 %v186, 64
      %v364 = vpop.permute.xlu0 %363
      %365 = vrot.lane.b32.xlu0 %v187, 64
      %v366 = vpop.permute.xlu0 %365
      %vm367 = vcmp.lt.s32.totalorder %v195, 64
      %v368 = vsel %vm367, %v364, %v366
      %v369 = vsel %vm367, %v366, %v364
      %370 = vst [vmem:[#allocation2 + $0x140] sm:$0xff] %v368
      %371 = vst [vmem:[#allocation2 + $0x148] sm:$0xff] %v369
      %372 = vrot.lane.b32.xlu0 %v186, 63
      %v373 = vpop.permute.xlu0 %372
      %374 = vrot.lane.b32.xlu0 %v187, 63
      %v375 = vpop.permute.xlu0 %374
      %vm376 = vcmp.lt.s32.totalorder %v195, 63
      %v377 = vsel %vm376, %v373, %v375
      %v378 = vsel %vm376, %v375, %v373
      %379 = vst [vmem:[#allocation2 + $0x150] sm:$0xff] %v377
      %380 = vst [vmem:[#allocation2 + $0x158] sm:$0xff] %v378
      %381 = vrot.lane.b32.xlu0 %v186, 62
      %v382 = vpop.permute.xlu0 %381
      %383 = vrot.lane.b32.xlu0 %v187, 62
      %v384 = vpop.permute.xlu0 %383
      %vm385 = vcmp.lt.s32.totalorder %v195, 62
      %v386 = vsel %vm385, %v382, %v384
      %v387 = vsel %vm385, %v384, %v382
      %388 = vst [vmem:[#allocation2 + $0x160] sm:$0xff] %v386
      %389 = vst [vmem:[#allocation2 + $0x168] sm:$0xff] %v387
      %390 = vrot.lane.b32.xlu0 %v186, 61
      %v391 = vpop.permute.xlu0 %390
      %392 = vrot.lane.b32.xlu0 %v187, 61
      %v393 = vpop.permute.xlu0 %392
      %vm394 = vcmp.lt.s32.totalorder %v195, 61
      %v395 = vsel %vm394, %v391, %v393
      %v396 = vsel %vm394, %v393, %v391
      %397 = vst [vmem:[#allocation2 + $0x170] sm:$0xff] %v395
      %398 = vst [vmem:[#allocation2 + $0x178] sm:$0xff] %v396
      %399 = vrot.lane.b32.xlu0 %v186, 60
      %v400 = vpop.permute.xlu0 %399
      %401 = vrot.lane.b32.xlu0 %v187, 60
      %v402 = vpop.permute.xlu0 %401
      %vm403 = vcmp.lt.s32.totalorder %v195, 60
      %v404 = vsel %vm403, %v400, %v402
      %v405 = vsel %vm403, %v402, %v400
      %406 = vst [vmem:[#allocation2 + $0x180] sm:$0xff] %v404
      %407 = vst [vmem:[#allocation2 + $0x188] sm:$0xff] %v405
      %v408 = vld [vmem:[#allocation2] sm:$0xff]
      %v409 = vld [vmem:[#allocation2 + $0x8] sm:$0xff]
      %v410 = vld [vmem:[#allocation2 + $0x10] sm:$0xff]
      %v411 = vld [vmem:[#allocation2 + $0x18] sm:$0xff]
      %v412 = vld [vmem:[#allocation2 + $0x20] sm:$0xff]
      %v413 = vld [vmem:[#allocation2 + $0x28] sm:$0xff]
      %v414 = vld [vmem:[#allocation2 + $0x30] sm:$0xff]
      %v415 = vld [vmem:[#allocation2 + $0x38] sm:$0xff]
      %v416 = vld [vmem:[#allocation2 + $0x40] sm:$0xff]
      %v417 = vld [vmem:[#allocation2 + $0x48] sm:$0xff]
      %v418 = vld [vmem:[#allocation2 + $0x50] sm:$0xff]
      %v419 = vld [vmem:[#allocation2 + $0x58] sm:$0xff]
      %v420 = vld [vmem:[#allocation2 + $0x60] sm:$0xff]
      %v421 = vld [vmem:[#allocation2 + $0x68] sm:$0xff]
      %v422 = vld [vmem:[#allocation2 + $0x70] sm:$0xff]
      %v423 = vld [vmem:[#allocation2 + $0x78] sm:$0xff]
      %v424 = vld [vmem:[#allocation2 + $0x80] sm:$0xff]
      %v425 = vld [vmem:[#allocation2 + $0x88] sm:$0xff]
      %v426 = vld [vmem:[#allocation2 + $0x90] sm:$0xff]
      %v427 = vld [vmem:[#allocation2 + $0x98] sm:$0xff]
      %v428 = vld [vmem:[#allocation2 + $0xa0] sm:$0xff]
      %v429 = vld [vmem:[#allocation2 + $0xa8] sm:$0xff]
      %v430 = vld [vmem:[#allocation2 + $0xb0] sm:$0xff]
      %v431 = vld [vmem:[#allocation2 + $0xb8] sm:$0xff]
      %v432 = vld [vmem:[#allocation2 + $0xc0] sm:$0xff]
      %v433 = vld [vmem:[#allocation2 + $0xc8] sm:$0xff]
      %v434 = vld [vmem:[#allocation2 + $0xd0] sm:$0xff]
      %v435 = vld [vmem:[#allocation2 + $0xd8] sm:$0xff]
      %v436 = vld [vmem:[#allocation2 + $0xe0] sm:$0xff]
      %v437 = vld [vmem:[#allocation2 + $0xe8] sm:$0xff]
      %v438 = vld [vmem:[#allocation2 + $0xf0] sm:$0xff]
      %v439 = vld [vmem:[#allocation2 + $0xf8] sm:$0xff]
      %v440 = vld [vmem:[#allocation2 + $0x100] sm:$0xff]
      %v441 = vld [vmem:[#allocation2 + $0x108] sm:$0xff]
      %v442 = vld [vmem:[#allocation2 + $0x110] sm:$0xff]
      %v443 = vld [vmem:[#allocation2 + $0x118] sm:$0xff]
      %v444 = vld [vmem:[#allocation2 + $0x120] sm:$0xff]
      %v445 = vld [vmem:[#allocation2 + $0x128] sm:$0xff]
      %v446 = vld [vmem:[#allocation2 + $0x130] sm:$0xff]
      %v447 = vld [vmem:[#allocation2 + $0x138] sm:$0xff]
      %v448 = vld [vmem:[#allocation2 + $0x140] sm:$0xff]
      %v449 = vld [vmem:[#allocation2 + $0x148] sm:$0xff]
      %v450 = vld [vmem:[#allocation2 + $0x150] sm:$0xff]
      %v451 = vld [vmem:[#allocation2 + $0x158] sm:$0xff]
      %v452 = vld [vmem:[#allocation2 + $0x160] sm:$0xff]
      %v453 = vld [vmem:[#allocation2 + $0x168] sm:$0xff]
      %v454 = vld [vmem:[#allocation2 + $0x170] sm:$0xff]
      %v455 = vld [vmem:[#allocation2 + $0x178] sm:$0xff]
      %v456 = vld [vmem:[#allocation2 + $0x180] sm:$0xff]
      %v457 = vld [vmem:[#allocation2 + $0x188] sm:$0xff]
      %v458 = vld [vmem:[#allocation2 + $0x190] sm:$0xff]
      %v459 = vld [vmem:[#allocation2 + $0x198] sm:$0xff]
      %v460 = vld [vmem:[#allocation2 + $0x1a0] sm:$0xff]
      %v461 = vld [vmem:[#allocation2 + $0x1a8] sm:$0xff]
      %v462 = vld [vmem:[#allocation2 + $0x1b0] sm:$0xff]
      %v463 = vld [vmem:[#allocation2 + $0x1b8] sm:$0xff]
      %v464 = vld [vmem:[#allocation2 + $0x1c0] sm:$0xff]
      %v465 = vld [vmem:[#allocation2 + $0x1c8] sm:$0xff]
      %v466 = vld [vmem:[#allocation2 + $0x1d0] sm:$0xff]
      %v467 = vld [vmem:[#allocation2 + $0x1d8] sm:$0xff]
      %v468 = vld [vmem:[#allocation2 + $0x1e0] sm:$0xff]
      %v469 = vld [vmem:[#allocation2 + $0x1e8] sm:$0xff]
      %v470 = vld [vmem:[#allocation2 + $0x1f0] sm:$0xff]
      %v471 = vld [vmem:[#allocation2 + $0x1f8] sm:$0xff]
      %472 = vmatprep.subr.mxu0 %v471
      %473 = vmatpush1.msra.mxu0 %v470
      %474 = vmatprep.subr.mxu0 %v469
      %475 = vmatpush1.msra.mxu0 %v468
      %476 = vmatprep.subr.mxu0 %v467
      %477 = vmatpush1.msra.mxu0 %v466
      %478 = vmatprep.subr.mxu0 %v465
      %479 = vmatpush1.msra.mxu0 %v464
      %480 = vmatprep.subr.mxu0 %v463
      %481 = vmatpush1.msra.mxu0 %v462
      %482 = vmatprep.subr.mxu0 %v461
      %483 = vmatpush1.msra.mxu0 %v460
      %484 = vmatprep.subr.mxu0 %v459
      %485 = vmatpush1.msra.mxu0 %v458
      %486 = vmatprep.subr.mxu0 %v457
      %487 = vmatpush1.msra.mxu0 %v456
      %488 = vmatprep.subr.mxu0 %v455
      %489 = vmatpush1.msra.mxu0 %v454
      %490 = vmatprep.subr.mxu0 %v453
      %491 = vmatpush1.msra.mxu0 %v452
      %492 = vmatprep.subr.mxu0 %v451
      %493 = vmatpush1.msra.mxu0 %v450
      %494 = vmatprep.subr.mxu0 %v449
      %495 = vmatpush1.msra.mxu0 %v448
      %496 = vmatprep.subr.mxu0 %v447
      %497 = vmatpush1.msra.mxu0 %v446
      %498 = vmatprep.subr.mxu0 %v445
      %499 = vmatpush1.msra.mxu0 %v444
      %500 = vmatprep.subr.mxu0 %v443
      %501 = vmatpush1.msra.mxu0 %v442
      %502 = vmatprep.subr.mxu0 %v441
      %503 = vmatpush1.msra.mxu0 %v440
      %504 = vmatprep.subr.mxu0 0.0
      %505 = vmatpush2.msra.mxu0 0.0
      %506 = vmatprep.subr.mxu0 0.0
      %507 = vmatpush2.msra.mxu0 0.0
      %508 = vmatprep.subr.mxu0 0.0
      %509 = vmatpush2.msra.mxu0 0.0
      %510 = vmatprep.subr.mxu0 0.0
      %511 = vmatpush2.msra.mxu0 0.0
      %512 = vmatprep.subr.mxu0 0.0
      %513 = vmatpush2.msra.mxu0 0.0
      %514 = vmatprep.subr.mxu0 0.0
      %515 = vmatpush2.msra.mxu0 0.0
      %516 = vmatprep.subr.mxu0 0.0
      %517 = vmatpush2.msra.mxu0 0.0
      %518 = vmatprep.subr.mxu0 0.0
      %519 = vmatpush2.msra.mxu0 0.0
      %520 = vmatprep.subr.mxu0 0.0
      %521 = vmatpush2.msra.mxu0 0.0
      %522 = vmatprep.subr.mxu0 0.0
      %523 = vmatpush2.msra.mxu0 0.0
      %524 = vmatprep.subr.mxu0 0.0
      %525 = vmatpush2.msra.mxu0 0.0
      %526 = vmatprep.subr.mxu0 0.0
      %527 = vmatpush2.msra.mxu0 0.0
      %528 = vmatprep.subr.mxu0 0.0
      %529 = vmatpush2.msra.mxu0 0.0
      %530 = vmatprep.subr.mxu0 0.0
      %531 = vmatpush2.msra.mxu0 0.0
      %532 = vmatprep.subr.mxu0 0.0
      %533 = vmatpush2.msra.mxu0 0.0
      %534 = vmatprep.subr.mxu0 0.0
      %535 = vmatpush2.msra.mxu0 0.0
      %536 = vmatprep.mubr.f32.mxu0 0.0
      %537 = vmatmul.mubr.f32.gmra.mxu0 %v184
      %v538 = vpop.f32.mrf.mxu0
      %v539 = vadd.f32 0.0, %v538
      %v540 = vpop.f32.mrf.mxu0
      %v541 = vadd.f32 0.0, %v540
      %542 = vdwg.mxu0
      %543 = vmatprep.subr.mxu0 %v439
      %544 = vmatpush1.msra.mxu0 %v438
      %545 = vmatprep.subr.mxu0 %v437
      %546 = vmatpush1.msra.mxu0 %v436
      %547 = vmatprep.subr.mxu0 %v435
      %548 = vmatpush1.msra.mxu0 %v434
      %549 = vmatprep.subr.mxu0 %v433
      %550 = vmatpush1.msra.mxu0 %v432
      %551 = vmatprep.subr.mxu0 %v431
      %552 = vmatpush1.msra.mxu0 %v430
      %553 = vmatprep.subr.mxu0 %v429
      %554 = vmatpush1.msra.mxu0 %v428
      %555 = vmatprep.subr.mxu0 %v427
      %556 = vmatpush1.msra.mxu0 %v426
      %557 = vmatprep.subr.mxu0 %v425
      %558 = vmatpush1.msra.mxu0 %v424
      %559 = vmatprep.subr.mxu0 %v423
      %560 = vmatpush1.msra.mxu0 %v422
      %561 = vmatprep.subr.mxu0 %v421
      %562 = vmatpush1.msra.mxu0 %v420
      %563 = vmatprep.subr.mxu0 %v419
      %564 = vmatpush1.msra.mxu0 %v418
      %565 = vmatprep.subr.mxu0 %v417
      %566 = vmatpush1.msra.mxu0 %v416
      %567 = vmatprep.subr.mxu0 %v415
      %568 = vmatpush1.msra.mxu0 %v414
      %569 = vmatprep.subr.mxu0 %v413
      %570 = vmatpush1.msra.mxu0 %v412
      %571 = vmatprep.subr.mxu0 %v411
      %572 = vmatpush1.msra.mxu0 %v410
      %573 = vmatprep.subr.mxu0 %v409
      %574 = vmatpush1.msra.mxu0 %v408
      %575 = vmatprep.subr.mxu0 0.0
      %576 = vmatpush2.msra.mxu0 0.0
      %577 = vmatprep.subr.mxu0 0.0
      %578 = vmatpush2.msra.mxu0 0.0
      %579 = vmatprep.subr.mxu0 0.0
      %580 = vmatpush2.msra.mxu0 0.0
      %581 = vmatprep.subr.mxu0 0.0
      %582 = vmatpush2.msra.mxu0 0.0
      %583 = vmatprep.subr.mxu0 0.0
      %584 = vmatpush2.msra.mxu0 0.0
      %585 = vmatprep.subr.mxu0 0.0
      %586 = vmatpush2.msra.mxu0 0.0
      %587 = vmatprep.subr.mxu0 0.0
      %588 = vmatpush2.msra.mxu0 0.0
      %589 = vmatprep.subr.mxu0 0.0
      %590 = vmatpush2.msra.mxu0 0.0
      %591 = vmatprep.subr.mxu0 0.0
      %592 = vmatpush2.msra.mxu0 0.0
      %593 = vmatprep.subr.mxu0 0.0
      %594 = vmatpush2.msra.mxu0 0.0
      %595 = vmatprep.subr.mxu0 0.0
      %596 = vmatpush2.msra.mxu0 0.0
      %597 = vmatprep.subr.mxu0 0.0
      %598 = vmatpush2.msra.mxu0 0.0
      %599 = vmatprep.subr.mxu0 0.0
      %600 = vmatpush2.msra.mxu0 0.0
      %601 = vmatprep.subr.mxu0 0.0
      %602 = vmatpush2.msra.mxu0 0.0
      %603 = vmatprep.subr.mxu0 0.0
      %604 = vmatpush2.msra.mxu0 0.0
      %605 = vmatprep.subr.mxu0 0.0
      %606 = vmatpush2.msra.mxu0 0.0
      %607 = vmatprep.mubr.f32.mxu0 0.0
      %608 = vmatmul.mubr.f32.gmra.mxu0 %v183
      %v609 = vpop.f32.mrf.mxu0
      %v610 = vadd.f32 %v539, %v609
      %v611 = vpop.f32.mrf.mxu0
      %v612 = vadd.f32 %v541, %v611
      %613 = vdwg.mxu0
      %v614 = vadd.f32 %v185, -0.75
      %616 = vset.pattern.permute.xlu0 0
      %617 = vperm.xlu0 %616, %v614
      %v618 = vpop.permute.xlu0 %617
      %v620 = vadd.f32 %v610, %v618
      %v621 = vadd.f32 %v612, %v618
      %v622 = vmax.f32 %v620, 0.0
      %v623 = vmax.f32 %v621, 0.0
      %624 = vst [vmem:[#allocation2] sm:$0xff] %v622
      %625 = vrot.lane.b32.xlu0 %v622, 127
      %v626 = vpop.permute.xlu0 %625
      %627 = vrot.lane.b32.xlu0 %v623, 127
      %v628 = vpop.permute.xlu0 %627
      %v629 = vsel %vm196, %v626, %v628
      %630 = vst [vmem:[#allocation2 + $0x10] sm:$0xff] %v629
      %631 = vrot.lane.b32.xlu0 %v622, 126
      %v632 = vpop.permute.xlu0 %631
      %633 = vrot.lane.b32.xlu0 %v623, 126
      %v634 = vpop.permute.xlu0 %633
      %v635 = vsel %vm205, %v632, %v634
      %636 = vst [vmem:[#allocation2 + $0x20] sm:$0xff] %v635
      %637 = vrot.lane.b32.xlu0 %v622, 125
      %v638 = vpop.permute.xlu0 %637
      %639 = vrot.lane.b32.xlu0 %v623, 125
      %v640 = vpop.permute.xlu0 %639
      %v641 = vsel %vm214, %v638, %v640
      %642 = vst [vmem:[#allocation2 + $0x30] sm:$0xff] %v641
      %643 = vrot.lane.b32.xlu0 %v622, 124
      %v644 = vpop.permute.xlu0 %643
      %645 = vrot.lane.b32.xlu0 %v623, 124
      %v646 = vpop.permute.xlu0 %645
      %v647 = vsel %vm223, %v644, %v646
      %648 = vst [vmem:[#allocation2 + $0x40] sm:$0xff] %v647
      %649 = vrot.lane.b32.xlu0 %v622, 112
      %v650 = vpop.permute.xlu0 %649
      %651 = vrot.lane.b32.xlu0 %v623, 112
      %v652 = vpop.permute.xlu0 %651
      %v653 = vsel %vm232, %v650, %v652
      %654 = vst [vmem:[#allocation2 + $0x50] sm:$0xff] %v653
      %655 = vrot.lane.b32.xlu0 %v622, 111
      %v656 = vpop.permute.xlu0 %655
      %657 = vrot.lane.b32.xlu0 %v623, 111
      %v658 = vpop.permute.xlu0 %657
      %v659 = vsel %vm241, %v656, %v658
      %660 = vst [vmem:[#allocation2 + $0x60] sm:$0xff] %v659
      %661 = vrot.lane.b32.xlu0 %v622, 110
      %v662 = vpop.permute.xlu0 %661
      %663 = vrot.lane.b32.xlu0 %v623, 110
      %v664 = vpop.permute.xlu0 %663
      %v665 = vsel %vm250, %v662, %v664
      %666 = vst [vmem:[#allocation2 + $0x70] sm:$0xff] %v665
      %667 = vrot.lane.b32.xlu0 %v622, 109
      %v668 = vpop.permute.xlu0 %667
      %669 = vrot.lane.b32.xlu0 %v623, 109
      %v670 = vpop.permute.xlu0 %669
      %v671 = vsel %vm259, %v668, %v670
      %672 = vst [vmem:[#allocation2 + $0x80] sm:$0xff] %v671
      %673 = vrot.lane.b32.xlu0 %v622, 108
      %v674 = vpop.permute.xlu0 %673
      %675 = vrot.lane.b32.xlu0 %v623, 108
      %v676 = vpop.permute.xlu0 %675
      %v677 = vsel %vm268, %v674, %v676
      %678 = vst [vmem:[#allocation2 + $0x90] sm:$0xff] %v677
      %679 = vrot.lane.b32.xlu0 %v622, 96
      %v680 = vpop.permute.xlu0 %679
      %681 = vrot.lane.b32.xlu0 %v623, 96
      %v682 = vpop.permute.xlu0 %681
      %v683 = vsel %vm277, %v680, %v682
      %684 = vst [vmem:[#allocation2 + $0xa0] sm:$0xff] %v683
      %685 = vrot.lane.b32.xlu0 %v622, 95
      %v686 = vpop.permute.xlu0 %685
      %687 = vrot.lane.b32.xlu0 %v623, 95
      %v688 = vpop.permute.xlu0 %687
      %v689 = vsel %vm286, %v686, %v688
      %690 = vst [vmem:[#allocation2 + $0xb0] sm:$0xff] %v689
      %691 = vrot.lane.b32.xlu0 %v622, 94
      %v692 = vpop.permute.xlu0 %691
      %693 = vrot.lane.b32.xlu0 %v623, 94
      %v694 = vpop.permute.xlu0 %693
      %v695 = vsel %vm295, %v692, %v694
      %696 = vst [vmem:[#allocation2 + $0xc0] sm:$0xff] %v695
      %697 = vrot.lane.b32.xlu0 %v622, 93
      %v698 = vpop.permute.xlu0 %697
      %699 = vrot.lane.b32.xlu0 %v623, 93
      %v700 = vpop.permute.xlu0 %699
      %v701 = vsel %vm304, %v698, %v700
      %702 = vst [vmem:[#allocation2 + $0xd0] sm:$0xff] %v701
      %703 = vrot.lane.b32.xlu0 %v622, 92
      %v704 = vpop.permute.xlu0 %703
      %705 = vrot.lane.b32.xlu0 %v623, 92
      %v706 = vpop.permute.xlu0 %705
      %v707 = vsel %vm313, %v704, %v706
      %708 = vst [vmem:[#allocation2 + $0xe0] sm:$0xff] %v707
      %709 = vrot.lane.b32.xlu0 %v622, 80
      %v710 = vpop.permute.xlu0 %709
      %711 = vrot.lane.b32.xlu0 %v623, 80
      %v712 = vpop.permute.xlu0 %711
      %v713 = vsel %vm322, %v710, %v712
      %714 = vst [vmem:[#allocation2 + $0xf0] sm:$0xff] %v713
      %715 = vrot.lane.b32.xlu0 %v622, 79
      %v716 = vpop.permute.xlu0 %715
      %717 = vrot.lane.b32.xlu0 %v623, 79
      %v718 = vpop.permute.xlu0 %717
      %v719 = vsel %vm331, %v716, %v718
      %720 = vst [vmem:[#allocation2 + $0x100] sm:$0xff] %v719
      %721 = vrot.lane.b32.xlu0 %v622, 78
      %v722 = vpop.permute.xlu0 %721
      %723 = vrot.lane.b32.xlu0 %v623, 78
      %v724 = vpop.permute.xlu0 %723
      %v725 = vsel %vm340, %v722, %v724
      %726 = vst [vmem:[#allocation2 + $0x110] sm:$0xff] %v725
      %727 = vrot.lane.b32.xlu0 %v622, 77
      %v728 = vpop.permute.xlu0 %727
      %729 = vrot.lane.b32.xlu0 %v623, 77
      %v730 = vpop.permute.xlu0 %729
      %v731 = vsel %vm349, %v728, %v730
      %732 = vst [vmem:[#allocation2 + $0x120] sm:$0xff] %v731
      %733 = vrot.lane.b32.xlu0 %v622, 76
      %v734 = vpop.permute.xlu0 %733
      %735 = vrot.lane.b32.xlu0 %v623, 76
      %v736 = vpop.permute.xlu0 %735
      %v737 = vsel %vm358, %v734, %v736
      %738 = vst [vmem:[#allocation2 + $0x130] sm:$0xff] %v737
      %739 = vrot.lane.b32.xlu0 %v622, 64
      %v740 = vpop.permute.xlu0 %739
      %741 = vrot.lane.b32.xlu0 %v623, 64
      %v742 = vpop.permute.xlu0 %741
      %v743 = vsel %vm367, %v740, %v742
      %744 = vst [vmem:[#allocation2 + $0x140] sm:$0xff] %v743
      %745 = vrot.lane.b32.xlu0 %v622, 63
      %v746 = vpop.permute.xlu0 %745
      %747 = vrot.lane.b32.xlu0 %v623, 63
      %v748 = vpop.permute.xlu0 %747
      %v749 = vsel %vm376, %v746, %v748
      %750 = vst [vmem:[#allocation2 + $0x150] sm:$0xff] %v749
      %751 = vrot.lane.b32.xlu0 %v622, 62
      %v752 = vpop.permute.xlu0 %751
      %753 = vrot.lane.b32.xlu0 %v623, 62
      %v754 = vpop.permute.xlu0 %753
      %v755 = vsel %vm385, %v752, %v754
      %756 = vst [vmem:[#allocation2 + $0x160] sm:$0xff] %v755
      %757 = vrot.lane.b32.xlu0 %v622, 61
      %v758 = vpop.permute.xlu0 %757
      %759 = vrot.lane.b32.xlu0 %v623, 61
      %v760 = vpop.permute.xlu0 %759
      %v761 = vsel %vm394, %v758, %v760
      %762 = vst [vmem:[#allocation2 + $0x170] sm:$0xff] %v761
      %763 = vrot.lane.b32.xlu0 %v622, 60
      %v764 = vpop.permute.xlu0 %763
      %765 = vrot.lane.b32.xlu0 %v623, 60
      %v766 = vpop.permute.xlu0 %765
      %v767 = vsel %vm403, %v764, %v766
      %768 = vst [vmem:[#allocation2 + $0x180] sm:$0xff] %v767
      %v769 = vld [vmem:[#allocation2] sm:$0xff]
      %v770 = vld [vmem:[#allocation2 + $0x10] sm:$0xff]
      %v771 = vld [vmem:[#allocation2 + $0x20] sm:$0xff]
      %v772 = vld [vmem:[#allocation2 + $0x30] sm:$0xff]
      %v773 = vld [vmem:[#allocation2 + $0x40] sm:$0xff]
      %v774 = vld [vmem:[#allocation2 + $0x50] sm:$0xff]
      %v775 = vld [vmem:[#allocation2 + $0x60] sm:$0xff]
      %v776 = vld [vmem:[#allocation2 + $0x70] sm:$0xff]
      %v777 = vld [vmem:[#allocation2 + $0x80] sm:$0xff]
      %v778 = vld [vmem:[#allocation2 + $0x90] sm:$0xff]
      %v779 = vld [vmem:[#allocation2 + $0xa0] sm:$0xff]
      %v780 = vld [vmem:[#allocation2 + $0xb0] sm:$0xff]
      %v781 = vld [vmem:[#allocation2 + $0xc0] sm:$0xff]
      %v782 = vld [vmem:[#allocation2 + $0xd0] sm:$0xff]
      %v783 = vld [vmem:[#allocation2 + $0xe0] sm:$0xff]
      %v784 = vld [vmem:[#allocation2 + $0xf0] sm:$0xff]
      %v785 = vld [vmem:[#allocation2 + $0x100] sm:$0xff]
      %v786 = vld [vmem:[#allocation2 + $0x110] sm:$0xff]
      %v787 = vld [vmem:[#allocation2 + $0x120] sm:$0xff]
      %v788 = vld [vmem:[#allocation2 + $0x130] sm:$0xff]
      %v789 = vld [vmem:[#allocation2 + $0x140] sm:$0xff]
      %v790 = vld [vmem:[#allocation2 + $0x150] sm:$0xff]
      %v791 = vld [vmem:[#allocation2 + $0x160] sm:$0xff]
      %v792 = vld [vmem:[#allocation2 + $0x170] sm:$0xff]
      %v793 = vld [vmem:[#allocation2 + $0x180] sm:$0xff]
      %v794 = vld [vmem:[#allocation2 + $0x190] sm:$0xff]
      %v795 = vld [vmem:[#allocation2 + $0x1a0] sm:$0xff]
      %v796 = vld [vmem:[#allocation2 + $0x1b0] sm:$0xff]
      %v797 = vld [vmem:[#allocation2 + $0x1c0] sm:$0xff]
      %v798 = vld [vmem:[#allocation2 + $0x1d0] sm:$0xff]
      %v799 = vld [vmem:[#allocation2 + $0x1e0] sm:$0xff]
      %v800 = vld [vmem:[#allocation2 + $0x1f0] sm:$0xff]
      %801 = vmatprep.subr.mxu0 0.0
      %802 = vmatpush1.msra.mxu0 %v800
      %803 = vmatprep.subr.mxu0 0.0
      %804 = vmatpush1.msra.mxu0 %v799
      %805 = vmatprep.subr.mxu0 0.0
      %806 = vmatpush1.msra.mxu0 %v798
      %807 = vmatprep.subr.mxu0 0.0
      %808 = vmatpush1.msra.mxu0 %v797
      %809 = vmatprep.subr.mxu0 0.0
      %810 = vmatpush1.msra.mxu0 %v796
      %811 = vmatprep.subr.mxu0 0.0
      %812 = vmatpush1.msra.mxu0 %v795
      %813 = vmatprep.subr.mxu0 0.0
      %814 = vmatpush1.msra.mxu0 %v794
      %815 = vmatprep.subr.mxu0 0.0
      %816 = vmatpush1.msra.mxu0 %v793
      %817 = vmatprep.subr.mxu0 0.0
      %818 = vmatpush1.msra.mxu0 %v792
      %819 = vmatprep.subr.mxu0 0.0
      %820 = vmatpush1.msra.mxu0 %v791
      %821 = vmatprep.subr.mxu0 0.0
      %822 = vmatpush1.msra.mxu0 %v790
      %823 = vmatprep.subr.mxu0 0.0
      %824 = vmatpush1.msra.mxu0 %v789
      %825 = vmatprep.subr.mxu0 0.0
      %826 = vmatpush1.msra.mxu0 %v788
      %827 = vmatprep.subr.mxu0 0.0
      %828 = vmatpush1.msra.mxu0 %v787
      %829 = vmatprep.subr.mxu0 0.0
      %830 = vmatpush1.msra.mxu0 %v786
      %831 = vmatprep.subr.mxu0 0.0
      %832 = vmatpush1.msra.mxu0 %v785
      %833 = vmatprep.subr.mxu0 0.0
      %834 = vmatpush2.msra.mxu0 0.0
      %835 = vmatprep.subr.mxu0 0.0
      %836 = vmatpush2.msra.mxu0 0.0
      %837 = vmatprep.subr.mxu0 0.0
      %838 = vmatpush2.msra.mxu0 0.0
      %839 = vmatprep.subr.mxu0 0.0
      %840 = vmatpush2.msra.mxu0 0.0
      %841 = vmatprep.subr.mxu0 0.0
      %842 = vmatpush2.msra.mxu0 0.0
      %843 = vmatprep.subr.mxu0 0.0
      %844 = vmatpush2.msra.mxu0 0.0
      %845 = vmatprep.subr.mxu0 0.0
      %846 = vmatpush2.msra.mxu0 0.0
      %847 = vmatprep.subr.mxu0 0.0
      %848 = vmatpush2.msra.mxu0 0.0
      %849 = vmatprep.subr.mxu0 0.0
      %850 = vmatpush2.msra.mxu0 0.0
      %851 = vmatprep.subr.mxu0 0.0
      %852 = vmatpush2.msra.mxu0 0.0
      %853 = vmatprep.subr.mxu0 0.0
      %854 = vmatpush2.msra.mxu0 0.0
      %855 = vmatprep.subr.mxu0 0.0
      %856 = vmatpush2.msra.mxu0 0.0
      %857 = vmatprep.subr.mxu0 0.0
      %858 = vmatpush2.msra.mxu0 0.0
      %859 = vmatprep.subr.mxu0 0.0
      %860 = vmatpush2.msra.mxu0 0.0
      %861 = vmatprep.subr.mxu0 0.0
      %862 = vmatpush2.msra.mxu0 0.0
      %863 = vmatprep.subr.mxu0 0.0
      %864 = vmatpush2.msra.mxu0 0.0
      %865 = vmatprep.mubr.f32.mxu0 0.0
      %866 = vmatmul.mubr.f32.gmra.mxu0 %v184
      %v867 = vpop.f32.mrf.mxu0
      %v868 = vadd.f32 0.0, %v867
      %v869 = vpop.f32.mrf.mxu0
      %870 = vdwg.mxu0
      %871 = vmatprep.subr.mxu0 0.0
      %872 = vmatpush1.msra.mxu0 %v784
      %873 = vmatprep.subr.mxu0 0.0
      %874 = vmatpush1.msra.mxu0 %v783
      %875 = vmatprep.subr.mxu0 0.0
      %876 = vmatpush1.msra.mxu0 %v782
      %877 = vmatprep.subr.mxu0 0.0
      %878 = vmatpush1.msra.mxu0 %v781
      %879 = vmatprep.subr.mxu0 0.0
      %880 = vmatpush1.msra.mxu0 %v780
      %881 = vmatprep.subr.mxu0 0.0
      %882 = vmatpush1.msra.mxu0 %v779
      %883 = vmatprep.subr.mxu0 0.0
      %884 = vmatpush1.msra.mxu0 %v778
      %885 = vmatprep.subr.mxu0 0.0
      %886 = vmatpush1.msra.mxu0 %v777
      %887 = vmatprep.subr.mxu0 0.0
      %888 = vmatpush1.msra.mxu0 %v776
      %889 = vmatprep.subr.mxu0 0.0
      %890 = vmatpush1.msra.mxu0 %v775
      %891 = vmatprep.subr.mxu0 0.0
      %892 = vmatpush1.msra.mxu0 %v774
      %893 = vmatprep.subr.mxu0 0.0
      %894 = vmatpush1.msra.mxu0 %v773
      %895 = vmatprep.subr.mxu0 0.0
      %896 = vmatpush1.msra.mxu0 %v772
      %897 = vmatprep.subr.mxu0 0.0
      %898 = vmatpush1.msra.mxu0 %v771
      %899 = vmatprep.subr.mxu0 0.0
      %900 = vmatpush1.msra.mxu0 %v770
      %901 = vmatprep.subr.mxu0 0.0
      %902 = vmatpush1.msra.mxu0 %v769
      %903 = vmatprep.subr.mxu0 0.0
      %904 = vmatpush2.msra.mxu0 0.0
      %905 = vmatprep.subr.mxu0 0.0
      %906 = vmatpush2.msra.mxu0 0.0
      %907 = vmatprep.subr.mxu0 0.0
      %908 = vmatpush2.msra.mxu0 0.0
      %909 = vmatprep.subr.mxu0 0.0
      %910 = vmatpush2.msra.mxu0 0.0
      %911 = vmatprep.subr.mxu0 0.0
      %912 = vmatpush2.msra.mxu0 0.0
      %913 = vmatprep.subr.mxu0 0.0
      %914 = vmatpush2.msra.mxu0 0.0
      %915 = vmatprep.subr.mxu0 0.0
      %916 = vmatpush2.msra.mxu0 0.0
      %917 = vmatprep.subr.mxu0 0.0
      %918 = vmatpush2.msra.mxu0 0.0
      %919 = vmatprep.subr.mxu0 0.0
      %920 = vmatpush2.msra.mxu0 0.0
      %921 = vmatprep.subr.mxu0 0.0
      %922 = vmatpush2.msra.mxu0 0.0
      %923 = vmatprep.subr.mxu0 0.0
      %924 = vmatpush2.msra.mxu0 0.0
      %925 = vmatprep.subr.mxu0 0.0
      %926 = vmatpush2.msra.mxu0 0.0
      %927 = vmatprep.subr.mxu0 0.0
      %928 = vmatpush2.msra.mxu0 0.0
      %929 = vmatprep.subr.mxu0 0.0
      %930 = vmatpush2.msra.mxu0 0.0
      %931 = vmatprep.subr.mxu0 0.0
      %932 = vmatpush2.msra.mxu0 0.0
      %933 = vmatprep.subr.mxu0 0.0
      %934 = vmatpush2.msra.mxu0 0.0
      %935 = vmatprep.mubr.f32.mxu0 0.0
      %936 = vmatmul.mubr.f32.gmra.mxu0 %v183
      %v937 = vpop.f32.mrf.mxu0
      %v938 = vadd.f32 %v868, %v937
      %v939 = vpop.f32.mrf.mxu0
      %940 = vdwg.mxu0
      %v941 = vadd.f32 %v185, -1.0
      %943 = vset.pattern.permute.xlu0 0
      %944 = vperm.xlu0 %943, %v941
      %v945 = vpop.permute.xlu0 %944
      %v947 = vadd.f32 %v938, %v945
      %v948 = vmax.f32 %v947, 0.0
      %949 = vst [vmem:[#allocation2] sm:$0xff] %v948
      %950 = vrot.lane.b32.xlu0 %v948, 127
      %v951 = vpop.permute.xlu0 %950
      %952 = vst [vmem:[#allocation2 + $0x10] sm:$0xff] %v951
      %953 = vrot.lane.b32.xlu0 %v948, 126
      %v954 = vpop.permute.xlu0 %953
      %955 = vst [vmem:[#allocation2 + $0x20] sm:$0xff] %v954
      %956 = vrot.lane.b32.xlu0 %v948, 125
      %v957 = vpop.permute.xlu0 %956
      %958 = vst [vmem:[#allocation2 + $0x30] sm:$0xff] %v957
      %959 = vrot.lane.b32.xlu0 %v948, 124
      %v960 = vpop.permute.xlu0 %959
      %961 = vst [vmem:[#allocation2 + $0x40] sm:$0xff] %v960
      %962 = vrot.lane.b32.xlu0 %v948, 112
      %v963 = vpop.permute.xlu0 %962
      %964 = vst [vmem:[#allocation2 + $0x50] sm:$0xff] %v963
      %965 = vrot.lane.b32.xlu0 %v948, 111
      %v966 = vpop.permute.xlu0 %965
      %967 = vst [vmem:[#allocation2 + $0x60] sm:$0xff] %v966
      %968 = vrot.lane.b32.xlu0 %v948, 110
      %v969 = vpop.permute.xlu0 %968
      %970 = vst [vmem:[#allocation2 + $0x70] sm:$0xff] %v969
      %971 = vrot.lane.b32.xlu0 %v948, 109
      %v972 = vpop.permute.xlu0 %971
      %973 = vst [vmem:[#allocation2 + $0x80] sm:$0xff] %v972
      %974 = vrot.lane.b32.xlu0 %v948, 108
      %v975 = vpop.permute.xlu0 %974
      %976 = vst [vmem:[#allocation2 + $0x90] sm:$0xff] %v975
      %977 = vrot.lane.b32.xlu0 %v948, 96
      %v978 = vpop.permute.xlu0 %977
      %979 = vst [vmem:[#allocation2 + $0xa0] sm:$0xff] %v978
      %980 = vrot.lane.b32.xlu0 %v948, 95
      %v981 = vpop.permute.xlu0 %980
      %982 = vst [vmem:[#allocation2 + $0xb0] sm:$0xff] %v981
      %983 = vrot.lane.b32.xlu0 %v948, 94
      %v984 = vpop.permute.xlu0 %983
      %985 = vst [vmem:[#allocation2 + $0xc0] sm:$0xff] %v984
      %986 = vrot.lane.b32.xlu0 %v948, 93
      %v987 = vpop.permute.xlu0 %986
      %988 = vst [vmem:[#allocation2 + $0xd0] sm:$0xff] %v987
      %989 = vrot.lane.b32.xlu0 %v948, 92
      %v990 = vpop.permute.xlu0 %989
      %991 = vst [vmem:[#allocation2 + $0xe0] sm:$0xff] %v990
      %992 = vrot.lane.b32.xlu0 %v948, 80
      %v993 = vpop.permute.xlu0 %992
      %994 = vst [vmem:[#allocation2 + $0xf0] sm:$0xff] %v993
      %995 = vrot.lane.b32.xlu0 %v948, 79
      %v996 = vpop.permute.xlu0 %995
      %997 = vst [vmem:[#allocation2 + $0x100] sm:$0xff] %v996
      %998 = vrot.lane.b32.xlu0 %v948, 78
      %v999 = vpop.permute.xlu0 %998
      %1000 = vst [vmem:[#allocation2 + $0x110] sm:$0xff] %v999
      %1001 = vrot.lane.b32.xlu0 %v948, 77
      %v1002 = vpop.permute.xlu0 %1001
      %1003 = vst [vmem:[#allocation2 + $0x120] sm:$0xff] %v1002
      %1004 = vrot.lane.b32.xlu0 %v948, 76
      %v1005 = vpop.permute.xlu0 %1004
      %1006 = vst [vmem:[#allocation2 + $0x130] sm:$0xff] %v1005
      %1007 = vrot.lane.b32.xlu0 %v948, 64
      %v1008 = vpop.permute.xlu0 %1007
      %1009 = vst [vmem:[#allocation2 + $0x140] sm:$0xff] %v1008
      %1010 = vrot.lane.b32.xlu0 %v948, 63
      %v1011 = vpop.permute.xlu0 %1010
      %1012 = vst [vmem:[#allocation2 + $0x150] sm:$0xff] %v1011
      %1013 = vrot.lane.b32.xlu0 %v948, 62
      %v1014 = vpop.permute.xlu0 %1013
      %1015 = vst [vmem:[#allocation2 + $0x160] sm:$0xff] %v1014
      %1016 = vrot.lane.b32.xlu0 %v948, 61
      %v1017 = vpop.permute.xlu0 %1016
      %1018 = vst [vmem:[#allocation2 + $0x170] sm:$0xff] %v1017
      %1019 = vrot.lane.b32.xlu0 %v948, 60
      %v1020 = vpop.permute.xlu0 %1019
      %1021 = vst [vmem:[#allocation2 + $0x180] sm:$0xff] %v1020
      %v1022 = vld [vmem:[#allocation2] sm:$0xff]
      %v1023 = vld [vmem:[#allocation2 + $0x10] sm:$0xff]
      %v1024 = vld [vmem:[#allocation2 + $0x20] sm:$0xff]
      %v1025 = vld [vmem:[#allocation2 + $0x30] sm:$0xff]
      %v1026 = vld [vmem:[#allocation2 + $0x40] sm:$0xff]
      %v1027 = vld [vmem:[#allocation2 + $0x50] sm:$0xff]
      %v1028 = vld [vmem:[#allocation2 + $0x60] sm:$0xff]
      %v1029 = vld [vmem:[#allocation2 + $0x70] sm:$0xff]
      %v1030 = vld [vmem:[#allocation2 + $0x80] sm:$0xff]
      %v1031 = vld [vmem:[#allocation2 + $0x90] sm:$0xff]
      %v1032 = vld [vmem:[#allocation2 + $0xa0] sm:$0xff]
      %v1033 = vld [vmem:[#allocation2 + $0xb0] sm:$0xff]
      %v1034 = vld [vmem:[#allocation2 + $0xc0] sm:$0xff]
      %v1035 = vld [vmem:[#allocation2 + $0xd0] sm:$0xff]
      %v1036 = vld [vmem:[#allocation2 + $0xe0] sm:$0xff]
      %v1037 = vld [vmem:[#allocation2 + $0xf0] sm:$0xff]
      %v1038 = vld [vmem:[#allocation2 + $0x100] sm:$0xff]
      %v1039 = vld [vmem:[#allocation2 + $0x110] sm:$0xff]
      %v1040 = vld [vmem:[#allocation2 + $0x120] sm:$0xff]
      %v1041 = vld [vmem:[#allocation2 + $0x130] sm:$0xff]
      %v1042 = vld [vmem:[#allocation2 + $0x140] sm:$0xff]
      %v1043 = vld [vmem:[#allocation2 + $0x150] sm:$0xff]
      %v1044 = vld [vmem:[#allocation2 + $0x160] sm:$0xff]
      %v1045 = vld [vmem:[#allocation2 + $0x170] sm:$0xff]
      %v1046 = vld [vmem:[#allocation2 + $0x180] sm:$0xff]
      %v1047 = vld [vmem:[#allocation2 + $0x190] sm:$0xff]
      %v1048 = vld [vmem:[#allocation2 + $0x1a0] sm:$0xff]
      %v1049 = vld [vmem:[#allocation2 + $0x1b0] sm:$0xff]
      %v1050 = vld [vmem:[#allocation2 + $0x1c0] sm:$0xff]
      %v1051 = vld [vmem:[#allocation2 + $0x1d0] sm:$0xff]
      %v1052 = vld [vmem:[#allocation2 + $0x1e0] sm:$0xff]
      %v1053 = vld [vmem:[#allocation2 + $0x1f0] sm:$0xff]
      %1054 = vmatprep.subr.mxu0 0.0
      %1055 = vmatpush1.msra.mxu0 %v1053
      %1056 = vmatprep.subr.mxu0 0.0
      %1057 = vmatpush1.msra.mxu0 %v1052
      %1058 = vmatprep.subr.mxu0 0.0
      %1059 = vmatpush1.msra.mxu0 %v1051
      %1060 = vmatprep.subr.mxu0 0.0
      %1061 = vmatpush1.msra.mxu0 %v1050
      %1062 = vmatprep.subr.mxu0 0.0
      %1063 = vmatpush1.msra.mxu0 %v1049
      %1064 = vmatprep.subr.mxu0 0.0
      %1065 = vmatpush1.msra.mxu0 %v1048
      %1066 = vmatprep.subr.mxu0 0.0
      %1067 = vmatpush1.msra.mxu0 %v1047
      %1068 = vmatprep.subr.mxu0 0.0
      %1069 = vmatpush1.msra.mxu0 %v1046
      %1070 = vmatprep.subr.mxu0 0.0
      %1071 = vmatpush1.msra.mxu0 %v1045
      %1072 = vmatprep.subr.mxu0 0.0
      %1073 = vmatpush1.msra.mxu0 %v1044
      %1074 = vmatprep.subr.mxu0 0.0
      %1075 = vmatpush1.msra.mxu0 %v1043
      %1076 = vmatprep.subr.mxu0 0.0
      %1077 = vmatpush1.msra.mxu0 %v1042
      %1078 = vmatprep.subr.mxu0 0.0
      %1079 = vmatpush1.msra.mxu0 %v1041
      %1080 = vmatprep.subr.mxu0 0.0
      %1081 = vmatpush1.msra.mxu0 %v1040
      %1082 = vmatprep.subr.mxu0 0.0
      %1083 = vmatpush1.msra.mxu0 %v1039
      %1084 = vmatprep.subr.mxu0 0.0
      %1085 = vmatpush1.msra.mxu0 %v1038
      %1086 = vmatprep.subr.mxu0 0.0
      %1087 = vmatpush2.msra.mxu0 0.0
      %1088 = vmatprep.subr.mxu0 0.0
      %1089 = vmatpush2.msra.mxu0 0.0
      %1090 = vmatprep.subr.mxu0 0.0
      %1091 = vmatpush2.msra.mxu0 0.0
      %1092 = vmatprep.subr.mxu0 0.0
      %1093 = vmatpush2.msra.mxu0 0.0
      %1094 = vmatprep.subr.mxu0 0.0
      %1095 = vmatpush2.msra.mxu0 0.0
      %1096 = vmatprep.subr.mxu0 0.0
      %1097 = vmatpush2.msra.mxu0 0.0
      %1098 = vmatprep.subr.mxu0 0.0
      %1099 = vmatpush2.msra.mxu0 0.0
      %1100 = vmatprep.subr.mxu0 0.0
      %1101 = vmatpush2.msra.mxu0 0.0
      %1102 = vmatprep.subr.mxu0 0.0
      %1103 = vmatpush2.msra.mxu0 0.0
      %1104 = vmatprep.subr.mxu0 0.0
      %1105 = vmatpush2.msra.mxu0 0.0
      %1106 = vmatprep.subr.mxu0 0.0
      %1107 = vmatpush2.msra.mxu0 0.0
      %1108 = vmatprep.subr.mxu0 0.0
      %1109 = vmatpush2.msra.mxu0 0.0
      %1110 = vmatprep.subr.mxu0 0.0
      %1111 = vmatpush2.msra.mxu0 0.0
      %1112 = vmatprep.subr.mxu0 0.0
      %1113 = vmatpush2.msra.mxu0 0.0
      %1114 = vmatprep.subr.mxu0 0.0
      %1115 = vmatpush2.msra.mxu0 0.0
      %1116 = vmatprep.subr.mxu0 0.0
      %1117 = vmatpush2.msra.mxu0 0.0
      %1118 = vmatprep.mubr.f32.mxu0 0.0
      %1119 = vmatmul.mubr.f32.gmra.mxu0 %v184
      %v1120 = vpop.f32.mrf.mxu0
      %v1121 = vadd.f32 0.0, %v1120
      %v1122 = vpop.f32.mrf.mxu0
      %1123 = vdwg.mxu0
      %1124 = vmatprep.subr.mxu0 0.0
      %1125 = vmatpush1.msra.mxu0 %v1037
      %1126 = vmatprep.subr.mxu0 0.0
      %1127 = vmatpush1.msra.mxu0 %v1036
      %1128 = vmatprep.subr.mxu0 0.0
      %1129 = vmatpush1.msra.mxu0 %v1035
      %1130 = vmatprep.subr.mxu0 0.0
      %1131 = vmatpush1.msra.mxu0 %v1034
      %1132 = vmatprep.subr.mxu0 0.0
      %1133 = vmatpush1.msra.mxu0 %v1033
      %1134 = vmatprep.subr.mxu0 0.0
      %1135 = vmatpush1.msra.mxu0 %v1032
      %1136 = vmatprep.subr.mxu0 0.0
      %1137 = vmatpush1.msra.mxu0 %v1031
      %1138 = vmatprep.subr.mxu0 0.0
      %1139 = vmatpush1.msra.mxu0 %v1030
      %1140 = vmatprep.subr.mxu0 0.0
      %1141 = vmatpush1.msra.mxu0 %v1029
      %1142 = vmatprep.subr.mxu0 0.0
      %1143 = vmatpush1.msra.mxu0 %v1028
      %1144 = vmatprep.subr.mxu0 0.0
      %1145 = vmatpush1.msra.mxu0 %v1027
      %1146 = vmatprep.subr.mxu0 0.0
      %1147 = vmatpush1.msra.mxu0 %v1026
      %1148 = vmatprep.subr.mxu0 0.0
      %1149 = vmatpush1.msra.mxu0 %v1025
      %1150 = vmatprep.subr.mxu0 0.0
      %1151 = vmatpush1.msra.mxu0 %v1024
      %1152 = vmatprep.subr.mxu0 0.0
      %1153 = vmatpush1.msra.mxu0 %v1023
      %1154 = vmatprep.subr.mxu0 0.0
      %1155 = vmatpush1.msra.mxu0 %v1022
      %1156 = vmatprep.subr.mxu0 0.0
      %1157 = vmatpush2.msra.mxu0 0.0
      %1158 = vmatprep.subr.mxu0 0.0
      %1159 = vmatpush2.msra.mxu0 0.0
      %1160 = vmatprep.subr.mxu0 0.0
      %1161 = vmatpush2.msra.mxu0 0.0
      %1162 = vmatprep.subr.mxu0 0.0
      %1163 = vmatpush2.msra.mxu0 0.0
      %1164 = vmatprep.subr.mxu0 0.0
      %1165 = vmatpush2.msra.mxu0 0.0
      %1166 = vmatprep.subr.mxu0 0.0
      %1167 = vmatpush2.msra.mxu0 0.0
      %1168 = vmatprep.subr.mxu0 0.0
      %1169 = vmatpush2.msra.mxu0 0.0
      %1170 = vmatprep.subr.mxu0 0.0
      %1171 = vmatpush2.msra.mxu0 0.0
      %1172 = vmatprep.subr.mxu0 0.0
      %1173 = vmatpush2.msra.mxu0 0.0
      %1174 = vmatprep.subr.mxu0 0.0
      %1175 = vmatpush2.msra.mxu0 0.0
      %1176 = vmatprep.subr.mxu0 0.0
      %1177 = vmatpush2.msra.mxu0 0.0
      %1178 = vmatprep.subr.mxu0 0.0
      %1179 = vmatpush2.msra.mxu0 0.0
      %1180 = vmatprep.subr.mxu0 0.0
      %1181 = vmatpush2.msra.mxu0 0.0
      %1182 = vmatprep.subr.mxu0 0.0
      %1183 = vmatpush2.msra.mxu0 0.0
      %1184 = vmatprep.subr.mxu0 0.0
      %1185 = vmatpush2.msra.mxu0 0.0
      %1186 = vmatprep.subr.mxu0 0.0
      %1187 = vmatpush2.msra.mxu0 0.0
      %1188 = vmatprep.mubr.f32.mxu0 0.0
      %1189 = vmatmul.mubr.f32.gmra.mxu0 %v183
      %v1190 = vpop.f32.mrf.mxu0
      %v1191 = vadd.f32 %v1121, %v1190
      %v1192 = vpop.f32.mrf.mxu0
      %1193 = vdwg.mxu0
      %v1194 = vadd.f32 %v185, 0.25
      %1196 = vset.pattern.permute.xlu0 0
      %1197 = vperm.xlu0 %1196, %v1194
      %v1198 = vpop.permute.xlu0 %1197
      %v1200 = vadd.f32 %v1191, %v1198
      %v1201 = vmax.f32 %v1200, 0.0
      %1202 = vst [vmem:[%s168] sm:$0xff] %v1201
      %p1203 = scmp.lt.s32.totalorder %s14, 1
      %s1204 = scalar_select %p1203, %s14, 1
      %s1205 = smul.addr %s1204, 8
      %s1206 = scalar_lea.vmem %s3, %s1205
      // Predicated region
      $region33: #{model_forward.1} parent=31 // pred_check
        %p1207 = pneg %p100
      $region34: #{model_forward.1} parent=31 // pred_check_branch
        %1209 = sbr.rel (%p1207) target = $region36
      $region35: #{model_forward.1} parent=31 // pred_region
        _
      $region36: #{model_forward.1} parent=31 // pred_fallthru
        _
    $region32: #{model_forward.1} parent=5 // pred_fallthru
      _
    %p1210 = scmp.le.s32.totalorder 2, %s9
    // Predicated region
    $region37: #{model_forward.1} parent=5 // pred_check
      %p1211 = pneg %p1210
    $region38: #{model_forward.1} parent=5 // pred_check_branch
      %1213 = sbr.rel (%p1211) target = $region40
    $region39: #{model_forward.1} parent=5 // pred_region
      %s1214 = ssub.s32 %s9, 2
      // Predicated region
      $region41: #{model_forward.1} parent=39 // pred_check
        %p1215 = pneg %p106
      $region42: #{model_forward.1} parent=39 // pred_check_branch
        %1217 = sbr.rel (%p1215) target = $region44
      $region43: #{model_forward.1} parent=39 // pred_region
        %p1218 = scmp.lt.s32.totalorder %s15, 1
        %s1219 = scalar_select %p1218, %s15, 1
        %s1220 = smul.addr %s1219, 8
        %s1221 = scalar_lea.vmem %s3, %s1220
      $region44: #{model_forward.1} parent=39 // pred_fallthru
        _
    $region40: #{model_forward.1} parent=5 // pred_fallthru
      _
  $region6: #{model_forward.1} parent=0 // loop_footer
    %s13 = sadd.s32 1, %s9
  $region7: #{model_forward.1} parent=0 // loop_footer_branch
    %8 = sbr.rel target = $region3
  $region8: #{model_forward.1} parent=0 // loop_exit
    _

</llo_original>
